<compile_context>
chip_gen: v7x
topology: tpu7x:2x2x1
jax: 0.10.0
libtpu: 0.0.40
codegen_flags: <defaults>
</compile_context>

<pallas_src>
import functools

import jax
import jax.numpy as jnp
import numpy as np
from jax import lax
from jax.experimental import pallas as pl
from jax.experimental.pallas import tpu as pltpu

EPS = 1e-5
LANE = 128
_VMEM_LIMIT = 32 * 1024 * 1024  # explicit budget; safe on v5e/v6e/v7x


# ----------------------------------------------------------------------------
# Pallas kernels
# ----------------------------------------------------------------------------
def _conv1_kernel(xa_ref, xb_ref, wa_ref, wb_ref, sel_ref, y_ref, stats_ref):
    """Fused concat + 3x3 'SAME' conv (pre-BN) + partial BN stats, one image.

    xa_ref:    (H+2, W*Ca)       f32  x2 part, zero row-halo top/bottom
    xb_ref:    (H+2, W*Cb)       f32  upsampled x1 part, zero row-halo
    wa_ref:    (3, W*Ca, W*Cp)   bf16 block-Toeplitz weights (kx/W folded in K/N)
    wb_ref:    (3, W*Cb, W*Cp)   bf16
    sel_ref:   (W*Cp, Cp)        f32  lane -> channel one-hot (per-channel stats)
    y_ref:     (H, W*Cp)         f32  pre-BN conv output, lane-dense (W*Cp%128==0)
    stats_ref: (2, Cp)           f32  per-image [sum, sum_sq] per channel
    """
    h = y_ref.shape[0]
    acc = None
    for ky in range(3):  # ky folded as accumulating MXU dots on shifted windows
        a = xa_ref[ky:ky + h, :].astype(jnp.bfloat16)
        b = xb_ref[ky:ky + h, :].astype(jnp.bfloat16)
        d = (jnp.dot(a, wa_ref[ky], preferred_element_type=jnp.float32)
             + jnp.dot(b, wb_ref[ky], preferred_element_type=jnp.float32))
        acc = d if acc is None else acc + d
    y_ref[...] = acc

    # One-pass partial BN stats; fold W lane-groups per channel with a tiny dot.
    sums = jnp.concatenate([jnp.sum(acc, axis=0, keepdims=True),
                            jnp.sum(acc * acc, axis=0, keepdims=True)], axis=0)
    stats_ref[...] = jnp.dot(sums, sel_ref[...],
                             preferred_element_type=jnp.float32)


def _conv2_kernel(y1p_ref, scale_ref, shift_ref, w_ref, sel_ref,
                  y_ref, stats_ref):
    """Fused BN1-affine + ReLU prologue + 3x3 'SAME' conv (pre-BN) + stats.

    y1p_ref:   (H+2, W*Cp1)      f32  pre-BN conv1 output, zero row-halo
    scale_ref: (1, W*Cp1)        f32  folded BN1 scale (gamma1 * rsqrt(var1+eps))
    shift_ref: (1, W*Cp1)        f32  folded BN1 shift (beta1 - mean1*scale1)
    w_ref:     (3, W*Cp1, W*Cp2) bf16 block-Toeplitz conv2 weights
    sel_ref:   (W*Cp2, Cp2)      f32
    y_ref:     (H, W*Cp2)        f32  pre-BN conv2 output, lane-dense
    stats_ref: (2, Cp2)          f32
    """
    h, kl = y_ref.shape[0], y1p_ref.shape[1]
    scale = scale_ref[...]
    shift = shift_ref[...]
    rows = lax.broadcasted_iota(jnp.int32, (h, kl), 0)
    acc = None
    for ky in range(3):
        win = y1p_ref[ky:ky + h, :]
        a = jnp.maximum(win * scale + shift, 0.0)  # BN1 + ReLU (VPU, under MXU)
        # Halo rows are zero in pre-BN space; re-zero them in activation space.
        if ky == 0:
            a = jnp.where(rows >= 1, a, 0.0)
        elif ky == 2:
            a = jnp.where(rows <= h - 2, a, 0.0)
        d = jnp.dot(a.astype(jnp.bfloat16), w_ref[ky],
                    preferred_element_type=jnp.float32)
        acc = d if acc is None else acc + d
    y_ref[...] = acc

    sums = jnp.concatenate([jnp.sum(acc, axis=0, keepdims=True),
                            jnp.sum(acc * acc, axis=0, keepdims=True)], axis=0)
    stats_ref[...] = jnp.dot(sums, sel_ref[...],
                             preferred_element_type=jnp.float32)


def _bn_relu_kernel(y_ref, scale_ref, shift_ref, o_ref):
    """Lane-dense per-channel affine (folded BN2) + ReLU epilogue (in place)."""
    o_ref[...] = jnp.maximum(y_ref[...] * scale_ref[...] + shift_ref[...], 0.0)


# ----------------------------------------------------------------------------
# pallas_call wrappers (grid over batch; "parallel" for v7x megacore)
# ----------------------------------------------------------------------------
def _conv1_pass(xa, xb, wa, wb, sel, hh, cmid_p):
    n, hp2, ka = xa.shape
    kb = xb.shape[2]
    nl = sel.shape[0]
    return pl.pallas_call(
        _conv1_kernel,
        out_shape=(jax.ShapeDtypeStruct((n, hh, nl), jnp.float32),
                   jax.ShapeDtypeStruct((n, 2, cmid_p), jnp.float32)),
        grid=(n,),
        in_specs=[
            pl.BlockSpec((None, hp2, ka), lambda i: (i, 0, 0)),
            pl.BlockSpec((None, hp2, kb), lambda i: (i, 0, 0)),
            pl.BlockSpec((3, ka, nl), lambda i: (0, 0, 0)),   # VMEM-resident
            pl.BlockSpec((3, kb, nl), lambda i: (0, 0, 0)),   # VMEM-resident
            pl.BlockSpec((nl, cmid_p), lambda i: (0, 0)),     # VMEM-resident
        ],
        out_specs=(pl.BlockSpec((None, hh, nl), lambda i: (i, 0, 0)),
                   pl.BlockSpec((None, 2, cmid_p), lambda i: (i, 0, 0))),
        compiler_params=pltpu.CompilerParams(
            dimension_semantics=("parallel",),
            vmem_limit_bytes=_VMEM_LIMIT),
    )(xa, xb, wa, wb, sel)


def _conv2_pass(y1p, scale1, shift1, wt2, sel, hh, cout_p):
    n, hp2, kl = y1p.shape
    nl = sel.shape[0]
    return pl.pallas_call(
        _conv2_kernel,
        out_shape=(jax.ShapeDtypeStruct((n, hh, nl), jnp.float32),
                   jax.ShapeDtypeStruct((n, 2, cout_p), jnp.float32)),
        grid=(n,),
        in_specs=[
            pl.BlockSpec((None, hp2, kl), lambda i: (i, 0, 0)),
            pl.BlockSpec((1, kl), lambda i: (0, 0)),
            pl.BlockSpec((1, kl), lambda i: (0, 0)),
            pl.BlockSpec((3, kl, nl), lambda i: (0, 0, 0)),   # VMEM-resident
            pl.BlockSpec((nl, cout_p), lambda i: (0, 0)),
        ],
        out_specs=(pl.BlockSpec((None, hh, nl), lambda i: (i, 0, 0)),
                   pl.BlockSpec((None, 2, cout_p), lambda i: (i, 0, 0))),
        compiler_params=pltpu.CompilerParams(
            dimension_semantics=("parallel",),
            vmem_limit_bytes=_VMEM_LIMIT),
    )(y1p, scale1, shift1, wt2, sel)


def _bn_relu_pass(y, scale, shift):
    n, hh, nl = y.shape
    return pl.pallas_call(
        _bn_relu_kernel,
        out_shape=jax.ShapeDtypeStruct((n, hh, nl), jnp.float32),
        grid=(n,),
        in_specs=[pl.BlockSpec((None, hh, nl), lambda i: (i, 0, 0)),
                  pl.BlockSpec((1, nl), lambda i: (0, 0)),
                  pl.BlockSpec((1, nl), lambda i: (0, 0))],
        out_specs=pl.BlockSpec((None, hh, nl), lambda i: (i, 0, 0)),
        input_output_aliases={0: 0},        # write in place onto the y2 buffer
        compiler_params=pltpu.CompilerParams(
            dimension_semantics=("parallel",),
            vmem_limit_bytes=_VMEM_LIMIT),
    )(y, scale, shift)


# ----------------------------------------------------------------------------
# Host-side helpers (plain JAX glue)
# ----------------------------------------------------------------------------
def _pad_channels_for_lanes(w_img, c):
    """Smallest c' >= c with (w_img * c') % 128 == 0 -> unmasked 128-lane stores."""
    step = LANE // int(np.gcd(int(w_img), LANE))
    return int(-(-c // step) * step)


def _conv3x3_toeplitz(w_hwio, w_img, cout_pad):
    """(3,3,Cin,Cout) -> (3, W*Cin, W*Cout_pad) block-Toeplitz weights.

    Wt[ky, wi*Cin+ci, wo*Cp+co] = w[ky, wi-wo+1, ci, co] if 0 <= wi-wo+1 <= 2
    else 0, i.e. 'SAME' padding along W is baked into the zero structure.
    """
    kh, kw, cin, cout = w_hwio.shape
    dx = jnp.arange(w_img)[:, None] - jnp.arange(w_img)[None, :] + (kw // 2)
    valid = (dx >= 0) & (dx <= kw - 1)
    dx_c = jnp.clip(dx, 0, kw - 1)
    wt = w_hwio[:, dx_c]                                     # (kh,wi,wo,ci,co)
    wt = wt * valid[None, :, :, None, None].astype(w_hwio.dtype)
    wt = jnp.transpose(wt, (0, 1, 3, 2, 4))                  # (kh,wi,ci,wo,co)
    wt = jnp.pad(wt, ((0, 0),) * 4 + ((0, cout_pad - cout),))
    return wt.reshape(kh, w_img * cin, w_img * cout_pad)


def _channel_select(w_img, c):
    """(W*C, C) one-hot matrix mapping lane index -> channel (in-kernel stats)."""
    lanes = jnp.arange(w_img * c) % c
    return (lanes[:, None] == jnp.arange(c)[None, :]).astype(jnp.float32)


def _finalize_stats(partials, count):
    s = jnp.sum(partials, axis=0)                            # (2, C)
    mean = s[0] / count
    var = jnp.maximum(s[1] / count - mean * mean, 0.0)
    return mean, lax.rsqrt(var + EPS)


def _interp_matrix(n_in, n_out):
    if n_in == 1:
        return jnp.ones((n_out, 1), jnp.float32)
    src = jnp.arange(n_out, dtype=jnp.float32) * (n_in - 1) / (n_out - 1)
    lo = jnp.clip(jnp.floor(src), 0, n_in - 2).astype(jnp.int32)
    frac = src - lo.astype(jnp.float32)
    oh_lo = jax.nn.one_hot(lo, n_in, dtype=jnp.float32)
    oh_hi = jax.nn.one_hot(lo + 1, n_in, dtype=jnp.float32)
    return (1.0 - frac)[:, None] * oh_lo + frac[:, None] * oh_hi


def upsample_bilinear_x2_align_corners(x_nhwc):
    n, h, w, c = x_nhwc.shape
    mh = _interp_matrix(h, 2 * h)
    mw = _interp_matrix(w, 2 * w)
    y = jnp.einsum('oh,nhwc->nowc', mh, x_nhwc)
    y = jnp.einsum('pw,nowc->nopc', mw, y)
    return y


# ----------------------------------------------------------------------------
# Up.forward  (NCHW in / NCHW out)
# ----------------------------------------------------------------------------
def up_forward(x1_nchw, x2_nchw, params):
    w1, b1, g1, be1, w2, b2, g2, be2 = params
    del b1, b2  # train-mode BN mean subtraction cancels conv biases exactly.

    x1 = jnp.transpose(x1_nchw, (0, 2, 3, 1)).astype(jnp.float32)
    x2 = jnp.transpose(x2_nchw, (0, 2, 3, 1)).astype(jnp.float32)

    # bilinear x2 upsample (align_corners=True) + pad to x2's spatial size.
    # TODO(synk): fold the (linear) W-direction interpolation into the x1
    # Toeplitz weight to shrink its K and skip one materialization.
    x1 = upsample_bilinear_x2_align_corners(x1)
    diff_y = x2.shape[1] - x1.shape[1]
    diff_x = x2.shape[2] - x1.shape[2]
    x1 = jnp.pad(x1, ((0, 0),
                      (diff_y // 2, diff_y - diff_y // 2),
                      (diff_x // 2, diff_x - diff_x // 2),
                      (0, 0)))

    n, hh, ww, ca = x2.shape
    cb = x1.shape[-1]
    cmid = w1.shape[-1]
    cout = w2.shape[-1]
    cmid_p = _pad_channels_for_lanes(ww, cmid)   # lane-dense 128-lane stores
    cout_p = _pad_channels_for_lanes(ww, cout)
    count = float(n * hh * ww)

    # Lane-pack (W folded into lanes) + 1-row zero halo ('SAME' in H).  The
    # channel concat is fused into conv1 by splitting the K contraction.
    xa = jnp.pad(x2.reshape(n, hh, ww * ca), ((0, 0), (1, 1), (0, 0)))
    xb = jnp.pad(x1.reshape(n, hh, ww * cb), ((0, 0), (1, 1), (0, 0)))

    wt1a = _conv3x3_toeplitz(w1[:, :, :ca, :], ww, cmid_p).astype(jnp.bfloat16)
    wt1b = _conv3x3_toeplitz(w1[:, :, ca:, :], ww, cmid_p).astype(jnp.bfloat16)
    sel1 = _channel_select(ww, cmid_p)

    # ---- pass 1: concat-fused conv1 (pre-BN) + partial stats ---------------
    y1, p1 = _conv1_pass(xa, xb, wt1a, wt1b, sel1, hh, cmid_p)
    mean1, inv1 = _finalize_stats(p1, count)

    # Fold BN1 into a lane-dense per-channel affine, consumed in conv2 prologue.
    scale1_c = jnp.pad(g1, (0, cmid_p - cmid)) * inv1
    shift1_c = jnp.pad(be1, (0, cmid_p - cmid)) - mean1 * scale1_c
    scale1 = jnp.tile(scale1_c, ww).reshape(1, ww * cmid_p)
    shift1 = jnp.tile(shift1_c, ww).reshape(1, ww * cmid_p)

    # conv2 weights: pad Cin to cmid_p (padded h lanes are zero anyway).
    w2_p = jnp.pad(w2, ((0, 0), (0, 0), (0, cmid_p - cmid), (0, 0)))
    wt2 = _conv3x3_toeplitz(w2_p, ww, cout_p).astype(jnp.bfloat16)
    sel2 = _channel_select(ww, cout_p)

    # ---- pass 2: BN1+ReLU fused prologue + conv2 (pre-BN) + partial stats ---
    y1p = jnp.pad(y1, ((0, 0), (1, 1), (0, 0)))   # 1-row halo in pre-BN space
    y2, p2 = _conv2_pass(y1p, scale1, shift1, wt2, sel2, hh, cout_p)
    mean2, inv2 = _finalize_stats(p2, count)

    # ---- pass 3: folded BN2 + ReLU epilogue, in place on y2 -----------------
    scale2_c = jnp.pad(g2, (0, cout_p - cout)) * inv2
    shift2_c = jnp.pad(be2, (0, cout_p - cout)) - mean2 * scale2_c
    scale2 = jnp.tile(scale2_c, ww).reshape(1, ww * cout_p)
    shift2 = jnp.tile(shift2_c, ww).reshape(1, ww * cout_p)
    out = _bn_relu_pass(y2, scale2, shift2)

    out = out.reshape(n, hh, ww, cout_p)[..., :cout]   # drop dead lane channels
    # TODO(synk): skip this layout-changing transpose if the consumer takes NHWC.
    return jnp.transpose(out, (0, 3, 1, 2))


# ----------------------------------------------------------------------------
# Pure-JAX f32 reference (mirrors the PyTorch module, incl. conv bias)
# ----------------------------------------------------------------------------
def double_conv_ref(x_nhwc, params):
    w1, b1, g1, be1, w2, b2, g2, be2 = params

    def block(x, w, b, g, be):
        y = lax.conv_general_dilated(
            x, w, (1, 1), 'SAME', dimension_numbers=('NHWC', 'HWIO', 'NHWC'))
        y = y + b.reshape(1, 1, 1, -1)
        mean = jnp.mean(y, axis=(0, 1, 2))
        var = jnp.mean((y - mean) ** 2, axis=(0, 1, 2))
        y = (y - mean) * lax.rsqrt(var + EPS) * g.reshape(1, 1, 1, -1) \
            + be.reshape(1, 1, 1, -1)
        return jnp.maximum(y, 0.0)

    y = block(x_nhwc, w1, b1, g1, be1)
    return block(y, w2, b2, g2, be2)


def up_forward_ref(x1_nchw, x2_nchw, params):
    x1 = jnp.transpose(x1_nchw, (0, 2, 3, 1))
    x2 = jnp.transpose(x2_nchw, (0, 2, 3, 1))
    x1 = upsample_bilinear_x2_align_corners(x1)
    diff_y = x2.shape[1] - x1.shape[1]
    diff_x = x2.shape[2] - x1.shape[2]
    x1 = jnp.pad(x1, ((0, 0),
                      (diff_y // 2, diff_y - diff_y // 2),
                      (diff_x // 2, diff_x - diff_x // 2),
                      (0, 0)))
    x = jnp.concatenate([x2, x1], axis=-1)
    y = double_conv_ref(x, params)
    return jnp.transpose(y, (0, 3, 1, 2))


# ----------------------------------------------------------------------------
def init_params(key, in_channels, out_channels):
    k1, k2, k3, k4 = jax.random.split(key, 4)
    w1 = 0.1 * jax.random.normal(k1, (3, 3, in_channels, out_channels), jnp.float32)
    b1 = 0.1 * jax.random.normal(k2, (out_channels,), jnp.float32)
    g1 = jnp.ones((out_channels,), jnp.float32)
    be1 = jnp.zeros((out_channels,), jnp.float32)
    w2 = 0.1 * jax.random.normal(k3, (3, 3, out_channels, out_channels), jnp.float32)
    b2 = 0.1 * jax.random.normal(k4, (out_channels,), jnp.float32)
    g2 = jnp.ones((out_channels,), jnp.float32)
    be2 = jnp.zeros((out_channels,), jnp.float32)
    return (w1, b1, g1, be1, w2, b2, g2, be2)


if __name__ == "__main__":
    # Up(in_channels=8, out_channels=4, bilinear=True)
    in_channels, out_channels = 8, 4
    N, H2, W2 = 2, 16, 16

    key = jax.random.PRNGKey(0)
    kx1, kx2, kp = jax.random.split(key, 3)
    # x1: lower-res decoder feature, x2: skip connection (both NCHW)
    x1 = jax.random.normal(kx1, (N, in_channels // 2, H2 // 2, W2 // 2), jnp.float32)
    x2 = jax.random.normal(kx2, (N, in_channels // 2, H2, W2), jnp.float32)
    params = init_params(kp, in_channels, out_channels)

    fwd = jax.jit(functools.partial(up_forward, params=params))
    out = jax.block_until_ready(fwd(x1, x2))

    ref = jax.block_until_ready(up_forward_ref(x1, x2, params))
    # Tolerance reflects bf16 MXU operands vs. the f32 reference (post-BN
    # activations are ~unit scale, so absolute error dominates).
    np.testing.assert_allclose(np.asarray(out), np.asarray(ref),
                               rtol=5e-2, atol=5e-2)
    assert out.shape == (N, out_channels, H2, W2)

    print("KERNEL_OK")
</pallas_src>

<mosaic_0001>
module attributes {stable_mosaic.version = 11 : i64} {
  func.func @_conv1_kernel(%arg0: i32, %arg1: memref<1x18x64xf32, #tpu.memory_space<vmem>>, %arg2: memref<1x18x64xf32, #tpu.memory_space<vmem>>, %arg3: memref<3x64x128xbf16, #tpu.memory_space<vmem>>, %arg4: memref<3x64x128xbf16, #tpu.memory_space<vmem>>, %arg5: memref<128x8xf32, #tpu.memory_space<vmem>>, %arg6: memref<1x16x128xf32, #tpu.memory_space<vmem>>, %arg7: memref<1x2x8xf32, #tpu.memory_space<vmem>>) attributes {dimension_semantics = [#tpu.dimension_semantics<parallel>], iteration_bounds = array<i64: 2>, scalar_prefetch = 0 : i64, scratch_operands = 0 : i64, tpu.core_type = #tpu.core_type<tc>, window_params = [{transform_indices = @transform_0, window_bounds = array<i64: 1, 18, 64>}, {transform_indices = @transform_1, window_bounds = array<i64: 1, 18, 64>}, {pipeline_mode = #tpu.pipeline_mode<synchronous>, transform_indices = @transform_2, window_bounds = array<i64: 3, 64, 128>}, {pipeline_mode = #tpu.pipeline_mode<synchronous>, transform_indices = @transform_3, window_bounds = array<i64: 3, 64, 128>}, {pipeline_mode = #tpu.pipeline_mode<synchronous>, transform_indices = @transform_4, window_bounds = array<i64: 128, 8>}, {transform_indices = @transform_5, window_bounds = array<i64: 1, 16, 128>}, {transform_indices = @transform_6, window_bounds = array<i64: 1, 2, 8>}]} {
    %c0 = arith.constant 0 : index
    %c0_0 = arith.constant 0 : index
    %c0_1 = arith.constant 0 : index
    %0 = vector.load %arg1[%c0, %c0_0, %c0_1] : memref<1x18x64xf32, #tpu.memory_space<vmem>>, vector<1x16x64xf32>
    %1 = vector.shape_cast %0 : vector<1x16x64xf32> to vector<16x64xf32>
    %2 = arith.truncf %1 : vector<16x64xf32> to vector<16x64xbf16>
    %c0_2 = arith.constant 0 : index
    %c0_3 = arith.constant 0 : index
    %c0_4 = arith.constant 0 : index
    %3 = vector.load %arg2[%c0_2, %c0_3, %c0_4] : memref<1x18x64xf32, #tpu.memory_space<vmem>>, vector<1x16x64xf32>
    %4 = vector.shape_cast %3 : vector<1x16x64xf32> to vector<16x64xf32>
    %5 = arith.truncf %4 : vector<16x64xf32> to vector<16x64xbf16>
    %c0_5 = arith.constant 0 : index
    %c0_6 = arith.constant 0 : index
    %c0_7 = arith.constant 0 : index
    %6 = vector.load %arg3[%c0_5, %c0_6, %c0_7] : memref<3x64x128xbf16, #tpu.memory_space<vmem>>, vector<1x64x128xbf16>
    %7 = vector.shape_cast %6 : vector<1x64x128xbf16> to vector<64x128xbf16>
    %cst = arith.constant dense<0.000000e+00> : vector<16x128xf32>
    %8 = tpu.matmul %2, %7, %cst {dimension_numbers = #tpu.dot_dimension_numbers<[1], [0], [0], [1], [0, 0, 1, 1], [], []>} : vector<16x64xbf16>, vector<64x128xbf16>, vector<16x128xf32> -> vector<16x128xf32>
    %c0_8 = arith.constant 0 : index
    %c0_9 = arith.constant 0 : index
    %c0_10 = arith.constant 0 : index
    %9 = vector.load %arg4[%c0_8, %c0_9, %c0_10] : memref<3x64x128xbf16, #tpu.memory_space<vmem>>, vector<1x64x128xbf16>
    %10 = vector.shape_cast %9 : vector<1x64x128xbf16> to vector<64x128xbf16>
    %cst_11 = arith.constant dense<0.000000e+00> : vector<16x128xf32>
    %11 = tpu.matmul %5, %10, %cst_11 {dimension_numbers = #tpu.dot_dimension_numbers<[1], [0], [0], [1], [0, 0, 1, 1], [], []>} : vector<16x64xbf16>, vector<64x128xbf16>, vector<16x128xf32> -> vector<16x128xf32>
    %12 = arith.addf %8, %11 : vector<16x128xf32>
    %c0_12 = arith.constant 0 : index
    %c1 = arith.constant 1 : index
    %c0_13 = arith.constant 0 : index
    %13 = vector.load %arg1[%c0_12, %c1, %c0_13] : memref<1x18x64xf32, #tpu.memory_space<vmem>>, vector<1x16x64xf32>
    %14 = vector.shape_cast %13 : vector<1x16x64xf32> to vector<16x64xf32>
    %15 = arith.truncf %14 : vector<16x64xf32> to vector<16x64xbf16>
    %c0_14 = arith.constant 0 : index
    %c1_15 = arith.constant 1 : index
    %c0_16 = arith.constant 0 : index
    %16 = vector.load %arg2[%c0_14, %c1_15, %c0_16] : memref<1x18x64xf32, #tpu.memory_space<vmem>>, vector<1x16x64xf32>
    %17 = vector.shape_cast %16 : vector<1x16x64xf32> to vector<16x64xf32>
    %18 = arith.truncf %17 : vector<16x64xf32> to vector<16x64xbf16>
    %c1_17 = arith.constant 1 : index
    %c0_18 = arith.constant 0 : index
    %c0_19 = arith.constant 0 : index
    %19 = vector.load %arg3[%c1_17, %c0_18, %c0_19] : memref<3x64x128xbf16, #tpu.memory_space<vmem>>, vector<1x64x128xbf16>
    %20 = vector.shape_cast %19 : vector<1x64x128xbf16> to vector<64x128xbf16>
    %cst_20 = arith.constant dense<0.000000e+00> : vector<16x128xf32>
    %21 = tpu.matmul %15, %20, %cst_20 {dimension_numbers = #tpu.dot_dimension_numbers<[1], [0], [0], [1], [0, 0, 1, 1], [], []>} : vector<16x64xbf16>, vector<64x128xbf16>, vector<16x128xf32> -> vector<16x128xf32>
    %c1_21 = arith.constant 1 : index
    %c0_22 = arith.constant 0 : index
    %c0_23 = arith.constant 0 : index
    %22 = vector.load %arg4[%c1_21, %c0_22, %c0_23] : memref<3x64x128xbf16, #tpu.memory_space<vmem>>, vector<1x64x128xbf16>
    %23 = vector.shape_cast %22 : vector<1x64x128xbf16> to vector<64x128xbf16>
    %cst_24 = arith.constant dense<0.000000e+00> : vector<16x128xf32>
    %24 = tpu.matmul %18, %23, %cst_24 {dimension_numbers = #tpu.dot_dimension_numbers<[1], [0], [0], [1], [0, 0, 1, 1], [], []>} : vector<16x64xbf16>, vector<64x128xbf16>, vector<16x128xf32> -> vector<16x128xf32>
    %25 = arith.addf %21, %24 : vector<16x128xf32>
    %26 = arith.addf %12, %25 : vector<16x128xf32>
    %c0_25 = arith.constant 0 : index
    %c2 = arith.constant 2 : index
    %c0_26 = arith.constant 0 : index
    %27 = vector.load %arg1[%c0_25, %c2, %c0_26] : memref<1x18x64xf32, #tpu.memory_space<vmem>>, vector<1x16x64xf32>
    %28 = vector.shape_cast %27 : vector<1x16x64xf32> to vector<16x64xf32>
    %29 = arith.truncf %28 : vector<16x64xf32> to vector<16x64xbf16>
    %c0_27 = arith.constant 0 : index
    %c2_28 = arith.constant 2 : index
    %c0_29 = arith.constant 0 : index
    %30 = vector.load %arg2[%c0_27, %c2_28, %c0_29] : memref<1x18x64xf32, #tpu.memory_space<vmem>>, vector<1x16x64xf32>
    %31 = vector.shape_cast %30 : vector<1x16x64xf32> to vector<16x64xf32>
    %32 = arith.truncf %31 : vector<16x64xf32> to vector<16x64xbf16>
    %c2_30 = arith.constant 2 : index
    %c0_31 = arith.constant 0 : index
    %c0_32 = arith.constant 0 : index
    %33 = vector.load %arg3[%c2_30, %c0_31, %c0_32] : memref<3x64x128xbf16, #tpu.memory_space<vmem>>, vector<1x64x128xbf16>
    %34 = vector.shape_cast %33 : vector<1x64x128xbf16> to vector<64x128xbf16>
    %cst_33 = arith.constant dense<0.000000e+00> : vector<16x128xf32>
    %35 = tpu.matmul %29, %34, %cst_33 {dimension_numbers = #tpu.dot_dimension_numbers<[1], [0], [0], [1], [0, 0, 1, 1], [], []>} : vector<16x64xbf16>, vector<64x128xbf16>, vector<16x128xf32> -> vector<16x128xf32>
    %c2_34 = arith.constant 2 : index
    %c0_35 = arith.constant 0 : index
    %c0_36 = arith.constant 0 : index
    %36 = vector.load %arg4[%c2_34, %c0_35, %c0_36] : memref<3x64x128xbf16, #tpu.memory_space<vmem>>, vector<1x64x128xbf16>
    %37 = vector.shape_cast %36 : vector<1x64x128xbf16> to vector<64x128xbf16>
    %cst_37 = arith.constant dense<0.000000e+00> : vector<16x128xf32>
    %38 = tpu.matmul %32, %37, %cst_37 {dimension_numbers = #tpu.dot_dimension_numbers<[1], [0], [0], [1], [0, 0, 1, 1], [], []>} : vector<16x64xbf16>, vector<64x128xbf16>, vector<16x128xf32> -> vector<16x128xf32>
    %39 = arith.addf %35, %38 : vector<16x128xf32>
    %40 = arith.addf %26, %39 : vector<16x128xf32>
    %c0_38 = arith.constant 0 : index
    %c0_39 = arith.constant 0 : index
    %c0_40 = arith.constant 0 : index
    %41 = vector.load %arg6[%c0_38, %c0_39, %c0_40] : memref<1x16x128xf32, #tpu.memory_space<vmem>>, vector<1x16x128xf32>
    %42 = vector.shape_cast %41 : vector<1x16x128xf32> to vector<16x128xf32>
    %43 = vector.shape_cast %40 : vector<16x128xf32> to vector<1x16x128xf32>
    tpu.vector_store %arg6[%c0_38, %c0_39, %c0_40], %43 {strides = array<i32>} : memref<1x16x128xf32, #tpu.memory_space<vmem>>, vector<1x16x128xf32>,
    %cst_41 = arith.constant dense<0.000000e+00> : vector<128xf32>
    %44 = vector.multi_reduction <add>, %40, %cst_41 [0] : vector<16x128xf32> to vector<128xf32>
    %45 = vector.shape_cast %44 : vector<128xf32> to vector<1x128xf32>
    %46 = arith.mulf %40, %40 : vector<16x128xf32>
    %cst_42 = arith.constant dense<0.000000e+00> : vector<128xf32>
    %47 = vector.multi_reduction <add>, %46, %cst_42 [0] : vector<16x128xf32> to vector<128xf32>
    %48 = vector.shape_cast %47 : vector<128xf32> to vector<1x128xf32>
    %49 = tpu.concatenate %45, %48 in 0 : vector<1x128xf32>, vector<1x128xf32> -> vector<2x128xf32>
    %c0_43 = arith.constant 0 : index
    %c0_44 = arith.constant 0 : index
    %50 = vector.load %arg5[%c0_43, %c0_44] : memref<128x8xf32, #tpu.memory_space<vmem>>, vector<128x8xf32>
    %cst_45 = arith.constant dense<0.000000e+00> : vector<2x8xf32>
    %51 = tpu.matmul %49, %50, %cst_45 {dimension_numbers = #tpu.dot_dimension_numbers<[1], [0], [0], [1], [0, 0, 1, 1], [], []>} : vector<2x128xf32>, vector<128x8xf32>, vector<2x8xf32> -> vector<2x8xf32>
    %c0_46 = arith.constant 0 : index
    %c0_47 = arith.constant 0 : index
    %c0_48 = arith.constant 0 : index
    %52 = vector.load %arg7[%c0_46, %c0_47, %c0_48] : memref<1x2x8xf32, #tpu.memory_space<vmem>>, vector<1x2x8xf32>
    %53 = vector.shape_cast %52 : vector<1x2x8xf32> to vector<2x8xf32>
    %54 = vector.shape_cast %51 : vector<2x8xf32> to vector<1x2x8xf32>
    tpu.vector_store %arg7[%c0_46, %c0_47, %c0_48], %54 {strides = array<i32>} : memref<1x2x8xf32, #tpu.memory_space<vmem>>, vector<1x2x8xf32>,
    return
  }
  func.func @transform_0(%arg0: i32) -> (i32, i32, i32) {
    %c0_i32 = arith.constant 0 : i32
    %c0_i32_0 = arith.constant 0 : i32
    %c0_i32_1 = arith.constant 0 : i32
    return %arg0, %c0_i32, %c0_i32_0 : i32, i32, i32
  }
  func.func @transform_1(%arg0: i32) -> (i32, i32, i32) {
    %c0_i32 = arith.constant 0 : i32
    %c0_i32_0 = arith.constant 0 : i32
    %c0_i32_1 = arith.constant 0 : i32
    return %arg0, %c0_i32, %c0_i32_0 : i32, i32, i32
  }
  func.func @transform_2(%arg0: i32) -> (i32, i32, i32) {
    %c0_i32 = arith.constant 0 : i32
    %c0_i32_0 = arith.constant 0 : i32
    %c0_i32_1 = arith.constant 0 : i32
    %c0_i32_2 = arith.constant 0 : i32
    return %c0_i32, %c0_i32_0, %c0_i32_1 : i32, i32, i32
  }
  func.func @transform_3(%arg0: i32) -> (i32, i32, i32) {
    %c0_i32 = arith.constant 0 : i32
    %c0_i32_0 = arith.constant 0 : i32
    %c0_i32_1 = arith.constant 0 : i32
    %c0_i32_2 = arith.constant 0 : i32
    return %c0_i32, %c0_i32_0, %c0_i32_1 : i32, i32, i32
  }
  func.func @transform_4(%arg0: i32) -> (i32, i32) {
    %c0_i32 = arith.constant 0 : i32
    %c0_i32_0 = arith.constant 0 : i32
    %c0_i32_1 = arith.constant 0 : i32
    return %c0_i32, %c0_i32_0 : i32, i32
  }
  func.func @transform_5(%arg0: i32) -> (i32, i32, i32) {
    %c0_i32 = arith.constant 0 : i32
    %c0_i32_0 = arith.constant 0 : i32
    %c0_i32_1 = arith.constant 0 : i32
    return %arg0, %c0_i32, %c0_i32_0 : i32, i32, i32
  }
  func.func @transform_6(%arg0: i32) -> (i32, i32, i32) {
    %c0_i32 = arith.constant 0 : i32
    %c0_i32_0 = arith.constant 0 : i32
    %c0_i32_1 = arith.constant 0 : i32
    return %arg0, %c0_i32, %c0_i32_0 : i32, i32, i32
  }
}

module attributes {stable_mosaic.version = 11 : i64} {
  func.func @_conv2_kernel(%arg0: i32, %arg1: memref<1x18x128xf32, #tpu.memory_space<vmem>>, %arg2: memref<1x128xf32, #tpu.memory_space<vmem>>, %arg3: memref<1x128xf32, #tpu.memory_space<vmem>>, %arg4: memref<3x128x128xbf16, #tpu.memory_space<vmem>>, %arg5: memref<128x8xf32, #tpu.memory_space<vmem>>, %arg6: memref<1x16x128xf32, #tpu.memory_space<vmem>>, %arg7: memref<1x2x8xf32, #tpu.memory_space<vmem>>) attributes {dimension_semantics = [#tpu.dimension_semantics<parallel>], iteration_bounds = array<i64: 2>, scalar_prefetch = 0 : i64, scratch_operands = 0 : i64, tpu.core_type = #tpu.core_type<tc>, window_params = [{transform_indices = @transform_0, window_bounds = array<i64: 1, 18, 128>}, {pipeline_mode = #tpu.pipeline_mode<synchronous>, transform_indices = @transform_1, window_bounds = array<i64: 1, 128>}, {pipeline_mode = #tpu.pipeline_mode<synchronous>, transform_indices = @transform_2, window_bounds = array<i64: 1, 128>}, {pipeline_mode = #tpu.pipeline_mode<synchronous>, transform_indices = @transform_3, window_bounds = array<i64: 3, 128, 128>}, {pipeline_mode = #tpu.pipeline_mode<synchronous>, transform_indices = @transform_4, window_bounds = array<i64: 128, 8>}, {transform_indices = @transform_5, window_bounds = array<i64: 1, 16, 128>}, {transform_indices = @transform_6, window_bounds = array<i64: 1, 2, 8>}]} {
    %c0 = arith.constant 0 : index
    %c0_0 = arith.constant 0 : index
    %0 = vector.load %arg2[%c0, %c0_0] : memref<1x128xf32, #tpu.memory_space<vmem>>, vector<1x128xf32>
    %c0_1 = arith.constant 0 : index
    %c0_2 = arith.constant 0 : index
    %1 = vector.load %arg3[%c0_1, %c0_2] : memref<1x128xf32, #tpu.memory_space<vmem>>, vector<1x128xf32>
    %2 = tpu.iota {dimensions = array<i32: 0>} : vector<16x128xi32>
    %c0_3 = arith.constant 0 : index
    %c0_4 = arith.constant 0 : index
    %c0_5 = arith.constant 0 : index
    %3 = vector.load %arg1[%c0_3, %c0_4, %c0_5] : memref<1x18x128xf32, #tpu.memory_space<vmem>>, vector<1x16x128xf32>
    %4 = vector.shape_cast %3 : vector<1x16x128xf32> to vector<16x128xf32>
    %5 = vector.broadcast %0 : vector<1x128xf32> to vector<16x128xf32>
    %6 = arith.mulf %4, %5 : vector<16x128xf32>
    %7 = vector.broadcast %1 : vector<1x128xf32> to vector<16x128xf32>
    %8 = arith.addf %6, %7 : vector<16x128xf32>
    %cst = arith.constant 0.000000e+00 : f32
    %9 = vector.broadcast %cst : f32 to vector<16x128xf32>
    %10 = arith.maximumf %8, %9 : vector<16x128xf32>
    %c1_i32 = arith.constant 1 : i32
    %11 = vector.broadcast %c1_i32 : i32 to vector<16x128xi32>
    %12 = arith.cmpi sge, %2, %11 : vector<16x128xi32>
    %cst_6 = arith.constant 0.000000e+00 : f32
    %13 = vector.broadcast %cst_6 : f32 to vector<16x128xf32>
    %14 = arith.select %12, %10, %13 : vector<16x128xi1>, vector<16x128xf32>
    %15 = arith.truncf %14 : vector<16x128xf32> to vector<16x128xbf16>
    %c0_7 = arith.constant 0 : index
    %c0_8 = arith.constant 0 : index
    %c0_9 = arith.constant 0 : index
    %16 = vector.load %arg4[%c0_7, %c0_8, %c0_9] : memref<3x128x128xbf16, #tpu.memory_space<vmem>>, vector<1x128x128xbf16>
    %17 = vector.shape_cast %16 : vector<1x128x128xbf16> to vector<128x128xbf16>
    %cst_10 = arith.constant dense<0.000000e+00> : vector<16x128xf32>
    %18 = tpu.matmul %15, %17, %cst_10 {dimension_numbers = #tpu.dot_dimension_numbers<[1], [0], [0], [1], [0, 0, 1, 1], [], []>} : vector<16x128xbf16>, vector<128x128xbf16>, vector<16x128xf32> -> vector<16x128xf32>
    %c0_11 = arith.constant 0 : index
    %c1 = arith.constant 1 : index
    %c0_12 = arith.constant 0 : index
    %19 = vector.load %arg1[%c0_11, %c1, %c0_12] : memref<1x18x128xf32, #tpu.memory_space<vmem>>, vector<1x16x128xf32>
    %20 = vector.shape_cast %19 : vector<1x16x128xf32> to vector<16x128xf32>
    %21 = vector.broadcast %0 : vector<1x128xf32> to vector<16x128xf32>
    %22 = arith.mulf %20, %21 : vector<16x128xf32>
    %23 = vector.broadcast %1 : vector<1x128xf32> to vector<16x128xf32>
    %24 = arith.addf %22, %23 : vector<16x128xf32>
    %cst_13 = arith.constant 0.000000e+00 : f32
    %25 = vector.broadcast %cst_13 : f32 to vector<16x128xf32>
    %26 = arith.maximumf %24, %25 : vector<16x128xf32>
    %27 = arith.truncf %26 : vector<16x128xf32> to vector<16x128xbf16>
    %c1_14 = arith.constant 1 : index
    %c0_15 = arith.constant 0 : index
    %c0_16 = arith.constant 0 : index
    %28 = vector.load %arg4[%c1_14, %c0_15, %c0_16] : memref<3x128x128xbf16, #tpu.memory_space<vmem>>, vector<1x128x128xbf16>
    %29 = vector.shape_cast %28 : vector<1x128x128xbf16> to vector<128x128xbf16>
    %cst_17 = arith.constant dense<0.000000e+00> : vector<16x128xf32>
    %30 = tpu.matmul %27, %29, %cst_17 {dimension_numbers = #tpu.dot_dimension_numbers<[1], [0], [0], [1], [0, 0, 1, 1], [], []>} : vector<16x128xbf16>, vector<128x128xbf16>, vector<16x128xf32> -> vector<16x128xf32>
    %31 = arith.addf %18, %30 : vector<16x128xf32>
    %c0_18 = arith.constant 0 : index
    %c2 = arith.constant 2 : index
    %c0_19 = arith.constant 0 : index
    %32 = vector.load %arg1[%c0_18, %c2, %c0_19] : memref<1x18x128xf32, #tpu.memory_space<vmem>>, vector<1x16x128xf32>
    %33 = vector.shape_cast %32 : vector<1x16x128xf32> to vector<16x128xf32>
    %34 = vector.broadcast %0 : vector<1x128xf32> to vector<16x128xf32>
    %35 = arith.mulf %33, %34 : vector<16x128xf32>
    %36 = vector.broadcast %1 : vector<1x128xf32> to vector<16x128xf32>
    %37 = arith.addf %35, %36 : vector<16x128xf32>
    %cst_20 = arith.constant 0.000000e+00 : f32
    %38 = vector.broadcast %cst_20 : f32 to vector<16x128xf32>
    %39 = arith.maximumf %37, %38 : vector<16x128xf32>
    %c14_i32 = arith.constant 14 : i32
    %40 = vector.broadcast %c14_i32 : i32 to vector<16x128xi32>
    %41 = arith.cmpi sle, %2, %40 : vector<16x128xi32>
    %cst_21 = arith.constant 0.000000e+00 : f32
    %42 = vector.broadcast %cst_21 : f32 to vector<16x128xf32>
    %43 = arith.select %41, %39, %42 : vector<16x128xi1>, vector<16x128xf32>
    %44 = arith.truncf %43 : vector<16x128xf32> to vector<16x128xbf16>
    %c2_22 = arith.constant 2 : index
    %c0_23 = arith.constant 0 : index
    %c0_24 = arith.constant 0 : index
    %45 = vector.load %arg4[%c2_22, %c0_23, %c0_24] : memref<3x128x128xbf16, #tpu.memory_space<vmem>>, vector<1x128x128xbf16>
    %46 = vector.shape_cast %45 : vector<1x128x128xbf16> to vector<128x128xbf16>
    %cst_25 = arith.constant dense<0.000000e+00> : vector<16x128xf32>
    %47 = tpu.matmul %44, %46, %cst_25 {dimension_numbers = #tpu.dot_dimension_numbers<[1], [0], [0], [1], [0, 0, 1, 1], [], []>} : vector<16x128xbf16>, vector<128x128xbf16>, vector<16x128xf32> -> vector<16x128xf32>
    %48 = arith.addf %31, %47 : vector<16x128xf32>
    %c0_26 = arith.constant 0 : index
    %c0_27 = arith.constant 0 : index
    %c0_28 = arith.constant 0 : index
    %49 = vector.load %arg6[%c0_26, %c0_27, %c0_28] : memref<1x16x128xf32, #tpu.memory_space<vmem>>, vector<1x16x128xf32>
    %50 = vector.shape_cast %49 : vector<1x16x128xf32> to vector<16x128xf32>
    %51 = vector.shape_cast %48 : vector<16x128xf32> to vector<1x16x128xf32>
    tpu.vector_store %arg6[%c0_26, %c0_27, %c0_28], %51 {strides = array<i32>} : memref<1x16x128xf32, #tpu.memory_space<vmem>>, vector<1x16x128xf32>,
    %cst_29 = arith.constant dense<0.000000e+00> : vector<128xf32>
    %52 = vector.multi_reduction <add>, %48, %cst_29 [0] : vector<16x128xf32> to vector<128xf32>
    %53 = vector.shape_cast %52 : vector<128xf32> to vector<1x128xf32>
    %54 = arith.mulf %48, %48 : vector<16x128xf32>
    %cst_30 = arith.constant dense<0.000000e+00> : vector<128xf32>
    %55 = vector.multi_reduction <add>, %54, %cst_30 [0] : vector<16x128xf32> to vector<128xf32>
    %56 = vector.shape_cast %55 : vector<128xf32> to vector<1x128xf32>
    %57 = tpu.concatenate %53, %56 in 0 : vector<1x128xf32>, vector<1x128xf32> -> vector<2x128xf32>
    %c0_31 = arith.constant 0 : index
    %c0_32 = arith.constant 0 : index
    %58 = vector.load %arg5[%c0_31, %c0_32] : memref<128x8xf32, #tpu.memory_space<vmem>>, vector<128x8xf32>
    %cst_33 = arith.constant dense<0.000000e+00> : vector<2x8xf32>
    %59 = tpu.matmul %57, %58, %cst_33 {dimension_numbers = #tpu.dot_dimension_numbers<[1], [0], [0], [1], [0, 0, 1, 1], [], []>} : vector<2x128xf32>, vector<128x8xf32>, vector<2x8xf32> -> vector<2x8xf32>
    %c0_34 = arith.constant 0 : index
    %c0_35 = arith.constant 0 : index
    %c0_36 = arith.constant 0 : index
    %60 = vector.load %arg7[%c0_34, %c0_35, %c0_36] : memref<1x2x8xf32, #tpu.memory_space<vmem>>, vector<1x2x8xf32>
    %61 = vector.shape_cast %60 : vector<1x2x8xf32> to vector<2x8xf32>
    %62 = vector.shape_cast %59 : vector<2x8xf32> to vector<1x2x8xf32>
    tpu.vector_store %arg7[%c0_34, %c0_35, %c0_36], %62 {strides = array<i32>} : memref<1x2x8xf32, #tpu.memory_space<vmem>>, vector<1x2x8xf32>,
    return
  }
  func.func @transform_0(%arg0: i32) -> (i32, i32, i32) {
    %c0_i32 = arith.constant 0 : i32
    %c0_i32_0 = arith.constant 0 : i32
    %c0_i32_1 = arith.constant 0 : i32
    return %arg0, %c0_i32, %c0_i32_0 : i32, i32, i32
  }
  func.func @transform_1(%arg0: i32) -> (i32, i32) {
    %c0_i32 = arith.constant 0 : i32
    %c0_i32_0 = arith.constant 0 : i32
    %c0_i32_1 = arith.constant 0 : i32
    return %c0_i32, %c0_i32_0 : i32, i32
  }
  func.func @transform_2(%arg0: i32) -> (i32, i32) {
    %c0_i32 = arith.constant 0 : i32
    %c0_i32_0 = arith.constant 0 : i32
    %c0_i32_1 = arith.constant 0 : i32
    return %c0_i32, %c0_i32_0 : i32, i32
  }
  func.func @transform_3(%arg0: i32) -> (i32, i32, i32) {
    %c0_i32 = arith.constant 0 : i32
    %c0_i32_0 = arith.constant 0 : i32
    %c0_i32_1 = arith.constant 0 : i32
    %c0_i32_2 = arith.constant 0 : i32
    return %c0_i32, %c0_i32_0, %c0_i32_1 : i32, i32, i32
  }
  func.func @transform_4(%arg0: i32) -> (i32, i32) {
    %c0_i32 = arith.constant 0 : i32
    %c0_i32_0 = arith.constant 0 : i32
    %c0_i32_1 = arith.constant 0 : i32
    return %c0_i32, %c0_i32_0 : i32, i32
  }
  func.func @transform_5(%arg0: i32) -> (i32, i32, i32) {
    %c0_i32 = arith.constant 0 : i32
    %c0_i32_0 = arith.constant 0 : i32
    %c0_i32_1 = arith.constant 0 : i32
    return %arg0, %c0_i32, %c0_i32_0 : i32, i32, i32
  }
  func.func @transform_6(%arg0: i32) -> (i32, i32, i32) {
    %c0_i32 = arith.constant 0 : i32
    %c0_i32_0 = arith.constant 0 : i32
    %c0_i32_1 = arith.constant 0 : i32
    return %arg0, %c0_i32, %c0_i32_0 : i32, i32, i32
  }
}

module attributes {stable_mosaic.version = 11 : i64} {
  func.func @_bn_relu_kernel(%arg0: i32, %arg1: memref<1x16x128xf32, #tpu.memory_space<vmem>>, %arg2: memref<1x128xf32, #tpu.memory_space<vmem>>, %arg3: memref<1x128xf32, #tpu.memory_space<vmem>>, %arg4: memref<1x16x128xf32, #tpu.memory_space<vmem>>) attributes {dimension_semantics = [#tpu.dimension_semantics<parallel>], iteration_bounds = array<i64: 2>, scalar_prefetch = 0 : i64, scratch_operands = 0 : i64, tpu.core_type = #tpu.core_type<tc>, window_params = [{transform_indices = @transform_0, window_bounds = array<i64: 1, 16, 128>}, {pipeline_mode = #tpu.pipeline_mode<synchronous>, transform_indices = @transform_1, window_bounds = array<i64: 1, 128>}, {pipeline_mode = #tpu.pipeline_mode<synchronous>, transform_indices = @transform_2, window_bounds = array<i64: 1, 128>}, {transform_indices = @transform_3, window_bounds = array<i64: 1, 16, 128>}]} {
    %c0 = arith.constant 0 : index
    %c0_0 = arith.constant 0 : index
    %c0_1 = arith.constant 0 : index
    %0 = vector.load %arg1[%c0, %c0_0, %c0_1] : memref<1x16x128xf32, #tpu.memory_space<vmem>>, vector<1x16x128xf32>
    %1 = vector.shape_cast %0 : vector<1x16x128xf32> to vector<16x128xf32>
    %c0_2 = arith.constant 0 : index
    %c0_3 = arith.constant 0 : index
    %2 = vector.load %arg2[%c0_2, %c0_3] : memref<1x128xf32, #tpu.memory_space<vmem>>, vector<1x128xf32>
    %3 = vector.broadcast %2 : vector<1x128xf32> to vector<16x128xf32>
    %4 = arith.mulf %1, %3 : vector<16x128xf32>
    %c0_4 = arith.constant 0 : index
    %c0_5 = arith.constant 0 : index
    %5 = vector.load %arg3[%c0_4, %c0_5] : memref<1x128xf32, #tpu.memory_space<vmem>>, vector<1x128xf32>
    %6 = vector.broadcast %5 : vector<1x128xf32> to vector<16x128xf32>
    %7 = arith.addf %4, %6 : vector<16x128xf32>
    %cst = arith.constant 0.000000e+00 : f32
    %8 = vector.broadcast %cst : f32 to vector<16x128xf32>
    %9 = arith.maximumf %7, %8 : vector<16x128xf32>
    %c0_6 = arith.constant 0 : index
    %c0_7 = arith.constant 0 : index
    %c0_8 = arith.constant 0 : index
    %10 = vector.load %arg4[%c0_6, %c0_7, %c0_8] : memref<1x16x128xf32, #tpu.memory_space<vmem>>, vector<1x16x128xf32>
    %11 = vector.shape_cast %10 : vector<1x16x128xf32> to vector<16x128xf32>
    %12 = vector.shape_cast %9 : vector<16x128xf32> to vector<1x16x128xf32>
    tpu.vector_store %arg4[%c0_6, %c0_7, %c0_8], %12 {strides = array<i32>} : memref<1x16x128xf32, #tpu.memory_space<vmem>>, vector<1x16x128xf32>,
    return
  }
  func.func @transform_0(%arg0: i32) -> (i32, i32, i32) {
    %c0_i32 = arith.constant 0 : i32
    %c0_i32_0 = arith.constant 0 : i32
    %c0_i32_1 = arith.constant 0 : i32
    return %arg0, %c0_i32, %c0_i32_0 : i32, i32, i32
  }
  func.func @transform_1(%arg0: i32) -> (i32, i32) {
    %c0_i32 = arith.constant 0 : i32
    %c0_i32_0 = arith.constant 0 : i32
    %c0_i32_1 = arith.constant 0 : i32
    return %c0_i32, %c0_i32_0 : i32, i32
  }
  func.func @transform_2(%arg0: i32) -> (i32, i32) {
    %c0_i32 = arith.constant 0 : i32
    %c0_i32_0 = arith.constant 0 : i32
    %c0_i32_1 = arith.constant 0 : i32
    return %c0_i32, %c0_i32_0 : i32, i32
  }
  func.func @transform_3(%arg0: i32) -> (i32, i32, i32) {
    %c0_i32 = arith.constant 0 : i32
    %c0_i32_0 = arith.constant 0 : i32
    %c0_i32_1 = arith.constant 0 : i32
    return %arg0, %c0_i32, %c0_i32_0 : i32, i32, i32
  }
}

</mosaic_0001>

<llo_original>
// kernel: up_forward.3
$region0: #{up_forward.3}
  #allocation0 [shape = 'u32[]', space=smem, size = 0x4, offset = 0x4, fixed_abs, tag = 'smem constant byte address 0x4 - core index']
  #allocation1 [shape = 'u32[144,128]{1,0:T(1,128)}', space=vmem, size = 0x12000, scoped, tag = 'internal scratch']
  %s0 = inlined_call_operand.vmem [shape: f32[2,18,64], index: 0, kind: input, shape index: {}]
  %s1 = inlined_call_operand.vmem [shape: f32[2,18,64], index: 1, kind: input, shape index: {}]
  %s2 = inlined_call_operand.vmem [shape: bf16[3,64,128], index: 2, kind: input, shape index: {}]
  %s3 = inlined_call_operand.vmem [shape: bf16[3,64,128], index: 3, kind: input, shape index: {}]
  %s4 = inlined_call_operand.vmem [shape: f32[128,8], index: 4, kind: input, shape index: {}]
  %s5 = inlined_call_operand.vmem [shape: f32[2,16,128], index: 5, kind: output, shape index: {0}]
  %s6 = inlined_call_operand.vmem [shape: f32[2,2,8], index: 6, kind: output, shape index: {1}]
  %7 = xla_tuple %s5, %s6
  %s8 = sld [smem:[#allocation0]]
  $region61: #{up_forward.3} parent=0
    _
  %s10 = ssub.s32 1, %s8
  %s11 = scalar_select 0, %s10, %s8
  loop: start=0, step=1, limit=4
  $region2: #{up_forward.3} parent=0 // loop_pre_header
    _
  $region3: #{up_forward.3} parent=0 // loop_header
    %s13 = sphi 0, %s17
    %p14 = scmp.ge.s32.totalorder %s13, 4
    %s23 = sphi 0, %s25
    %s26 = sphi 0, %s23
    %s27 = sphi 0, %s26
    %s43 = sphi 0, %s27
    %s49 = sphi 0, %s51
    %s52 = sphi 0, %s49
    %s53 = sphi 0, %s52
    %s69 = sphi 0, %s53
    %s73 = sphi 0, %s73
    %s75 = sphi 0, %s73
    %s76 = sphi 0, %s75
    %s90 = sphi 0, %s76
    %s94 = sphi 0, %s94
    %s96 = sphi 0, %s94
    %s97 = sphi 0, %s96
    %s111 = sphi 0, %s97
    %s115 = sphi 0, %s115
    %s117 = sphi 0, %s115
    %s118 = sphi 0, %s117
    %s132 = sphi 0, %s118
    %s138 = sphi 0, %s140
    %s141 = sphi 0, %s138
    %s142 = sphi 0, %s141
    %s158 = sphi 0, %s142
    %s164 = sphi 0, %s166
    %s167 = sphi 0, %s164
    %s168 = sphi 0, %s167
    %s184 = sphi 0, %s168
  $region4: #{up_forward.3} parent=0 // loop_header_branch
    %16 = sbr.rel (%p14) target = $region8
  $region5: #{up_forward.3} parent=0 // loop_body
    %s18 = ssub.s32 %s13, 1
    %s19 = ssub.s32 %s13, 2
    %s20 = sadd.s32 %s13, 1
    %s21 = ssub.s32 %s13, %s20
    %p22 = scmp.eq.s32.totalorder %s21, 0
    %s24 = sadd.s32 %s23, 1
    %s25 = scalar_select %p22, %s23, %s24
    %p28 = pneg %p22
    %p29 = scmp.eq.s32.totalorder %s13, 1
    %p30 = por %p28, %p29
    %p31 = scmp.ne.s32.totalorder %s23, %s26
    %p32 = scmp.eq.s32.totalorder %s13, 0
    %p33 = por %p31, %p32
    %p34 = scmp.ne.s32.totalorder %s23, %s26
    %p35 = scmp.eq.s32.totalorder %s18, 1
    %p36 = por %p34, %p35
    %p37 = scmp.ne.s32.totalorder %s26, %s27
    %p38 = scmp.eq.s32.totalorder %s18, 0
    %p39 = por %p37, %p38
    %p40 = scmp.ne.s32.totalorder %s26, %s27
    %p41 = scmp.eq.s32.totalorder %s19, 1
    %p42 = por %p40, %p41
    %p44 = scmp.ne.s32.totalorder %s27, %s43
    %p45 = scmp.eq.s32.totalorder %s19, 0
    %p46 = por %p44, %p45
    %s47 = ssub.s32 %s13, %s20
    %p48 = scmp.eq.s32.totalorder %s47, 0
    %s50 = sadd.s32 %s49, 1
    %s51 = scalar_select %p48, %s49, %s50
    %p54 = pneg %p48
    %p55 = scmp.eq.s32.totalorder %s13, 1
    %p56 = por %p54, %p55
    %p57 = scmp.ne.s32.totalorder %s49, %s52
    %p58 = scmp.eq.s32.totalorder %s13, 0
    %p59 = por %p57, %p58
    %p60 = scmp.ne.s32.totalorder %s49, %s52
    %p61 = scmp.eq.s32.totalorder %s18, 1
    %p62 = por %p60, %p61
    %p63 = scmp.ne.s32.totalorder %s52, %s53
    %p64 = scmp.eq.s32.totalorder %s18, 0
    %p65 = por %p63, %p64
    %p66 = scmp.ne.s32.totalorder %s52, %s53
    %p67 = scmp.eq.s32.totalorder %s19, 1
    %p68 = por %p66, %p67
    %p70 = scmp.ne.s32.totalorder %s53, %s69
    %p71 = scmp.eq.s32.totalorder %s19, 0
    %p72 = por %p70, %p71
    %s74 = sadd.s32 %s73, 1
    %p77 = scmp.eq.s32.totalorder %s13, 1
    %p78 = scmp.ne.s32.totalorder %s73, %s75
    %p79 = scmp.eq.s32.totalorder %s13, 0
    %p80 = por %p78, %p79
    %p81 = scmp.ne.s32.totalorder %s73, %s75
    %p82 = scmp.eq.s32.totalorder %s18, 1
    %p83 = por %p81, %p82
    %p84 = scmp.ne.s32.totalorder %s75, %s76
    %p85 = scmp.eq.s32.totalorder %s18, 0
    %p86 = por %p84, %p85
    %p87 = scmp.ne.s32.totalorder %s75, %s76
    %p88 = scmp.eq.s32.totalorder %s19, 1
    %p89 = por %p87, %p88
    %p91 = scmp.ne.s32.totalorder %s76, %s90
    %p92 = scmp.eq.s32.totalorder %s19, 0
    %p93 = por %p91, %p92
    %s95 = sadd.s32 %s94, 1
    %p98 = scmp.eq.s32.totalorder %s13, 1
    %p99 = scmp.ne.s32.totalorder %s94, %s96
    %p100 = scmp.eq.s32.totalorder %s13, 0
    %p101 = por %p99, %p100
    %p102 = scmp.ne.s32.totalorder %s94, %s96
    %p103 = scmp.eq.s32.totalorder %s18, 1
    %p104 = por %p102, %p103
    %p105 = scmp.ne.s32.totalorder %s96, %s97
    %p106 = scmp.eq.s32.totalorder %s18, 0
    %p107 = por %p105, %p106
    %p108 = scmp.ne.s32.totalorder %s96, %s97
    %p109 = scmp.eq.s32.totalorder %s19, 1
    %p110 = por %p108, %p109
    %p112 = scmp.ne.s32.totalorder %s97, %s111
    %p113 = scmp.eq.s32.totalorder %s19, 0
    %p114 = por %p112, %p113
    %s116 = sadd.s32 %s115, 1
    %p119 = scmp.eq.s32.totalorder %s13, 1
    %p120 = scmp.ne.s32.totalorder %s115, %s117
    %p121 = scmp.eq.s32.totalorder %s13, 0
    %p122 = por %p120, %p121
    %p123 = scmp.ne.s32.totalorder %s115, %s117
    %p124 = scmp.eq.s32.totalorder %s18, 1
    %p125 = por %p123, %p124
    %p126 = scmp.ne.s32.totalorder %s117, %s118
    %p127 = scmp.eq.s32.totalorder %s18, 0
    %p128 = por %p126, %p127
    %p129 = scmp.ne.s32.totalorder %s117, %s118
    %p130 = scmp.eq.s32.totalorder %s19, 1
    %p131 = por %p129, %p130
    %p133 = scmp.ne.s32.totalorder %s118, %s132
    %p134 = scmp.eq.s32.totalorder %s19, 0
    %p135 = por %p133, %p134
    %s136 = ssub.s32 %s13, %s20
    %p137 = scmp.eq.s32.totalorder %s136, 0
    %s139 = sadd.s32 %s138, 1
    %s140 = scalar_select %p137, %s138, %s139
    %p143 = pneg %p137
    %p144 = scmp.eq.s32.totalorder %s13, 1
    %p145 = por %p143, %p144
    %p146 = scmp.ne.s32.totalorder %s138, %s141
    %p147 = scmp.eq.s32.totalorder %s13, 0
    %p148 = por %p146, %p147
    %p149 = scmp.ne.s32.totalorder %s138, %s141
    %p150 = scmp.eq.s32.totalorder %s18, 1
    %p151 = por %p149, %p150
    %p152 = scmp.ne.s32.totalorder %s141, %s142
    %p153 = scmp.eq.s32.totalorder %s18, 0
    %p154 = por %p152, %p153
    %p155 = scmp.ne.s32.totalorder %s141, %s142
    %p156 = scmp.eq.s32.totalorder %s19, 1
    %p157 = por %p155, %p156
    %p159 = scmp.ne.s32.totalorder %s142, %s158
    %p160 = scmp.eq.s32.totalorder %s19, 0
    %p161 = por %p159, %p160
    %s162 = ssub.s32 %s13, %s20
    %p163 = scmp.eq.s32.totalorder %s162, 0
    %s165 = sadd.s32 %s164, 1
    %s166 = scalar_select %p163, %s164, %s165
    %p169 = pneg %p163
    %p170 = scmp.eq.s32.totalorder %s13, 1
    %p171 = por %p169, %p170
    %p172 = scmp.ne.s32.totalorder %s164, %s167
    %p173 = scmp.eq.s32.totalorder %s13, 0
    %p174 = por %p172, %p173
    %p175 = scmp.ne.s32.totalorder %s164, %s167
    %p176 = scmp.eq.s32.totalorder %s18, 1
    %p177 = por %p175, %p176
    %p178 = scmp.ne.s32.totalorder %s167, %s168
    %p179 = scmp.eq.s32.totalorder %s18, 0
    %p180 = por %p178, %p179
    %p181 = scmp.ne.s32.totalorder %s167, %s168
    %p182 = scmp.eq.s32.totalorder %s19, 1
    %p183 = por %p181, %p182
    %p185 = scmp.ne.s32.totalorder %s168, %s184
    %p186 = scmp.eq.s32.totalorder %s19, 0
    %p187 = por %p185, %p186
    %p188 = scmp.le.s32.totalorder 1, %s13
    %p189 = scmp.lt.s32.totalorder %s13, 3
    %p190 = pnand %p188, %p189
    %p191 = pneg %p190
    // Predicated region
    $region9: #{up_forward.3} parent=5 // pred_check
      _
    $region10: #{up_forward.3} parent=5 // pred_check_branch
      %193 = sbr.rel (%p190) target = $region12
    $region11: #{up_forward.3} parent=5 // pred_region
      %s194 = ssub.s32 %s13, 1
      // Predicated region
      $region13: #{up_forward.3} parent=11 // pred_check
        %p195 = pneg %p86
      $region14: #{up_forward.3} parent=11 // pred_check_branch
        %197 = sbr.rel (%p195) target = $region16
      $region15: #{up_forward.3} parent=11 // pred_region
        _
      $region16: #{up_forward.3} parent=11 // pred_fallthru
        _
      // Predicated region
      $region17: #{up_forward.3} parent=11 // pred_check
        %p198 = pneg %p107
      $region18: #{up_forward.3} parent=11 // pred_check_branch
        %200 = sbr.rel (%p198) target = $region20
      $region19: #{up_forward.3} parent=11 // pred_region
        _
      $region20: #{up_forward.3} parent=11 // pred_fallthru
        _
      // Predicated region
      $region21: #{up_forward.3} parent=11 // pred_check
        %p201 = pneg %p128
      $region22: #{up_forward.3} parent=11 // pred_check_branch
        %203 = sbr.rel (%p201) target = $region24
      $region23: #{up_forward.3} parent=11 // pred_region
        _
      $region24: #{up_forward.3} parent=11 // pred_fallthru
        _
    $region12: #{up_forward.3} parent=5 // pred_fallthru
      _
    %p204 = scmp.lt.s32.totalorder %s13, 2
    // Predicated region
    $region25: #{up_forward.3} parent=5 // pred_check
      %p205 = pneg %p204
    $region26: #{up_forward.3} parent=5 // pred_check_branch
      %207 = sbr.rel (%p205) target = $region28
    $region27: #{up_forward.3} parent=5 // pred_region
      // Predicated region
      $region29: #{up_forward.3} parent=27 // pred_check
        %p208 = pneg %p33
      $region30: #{up_forward.3} parent=27 // pred_check_branch
        %210 = sbr.rel (%p208) target = $region32
      $region31: #{up_forward.3} parent=27 // pred_region
        %p211 = scmp.lt.s32.totalorder %s13, 1
        %s212 = scalar_select %p211, %s13, 1
        %s213 = smul.addr %s212, 3
        %s214 = smul.addr %s213, 8
        %s215 = scalar_lea.vmem %s0, %s214
      $region32: #{up_forward.3} parent=27 // pred_fallthru
        _
      // Predicated region
      $region33: #{up_forward.3} parent=27 // pred_check
        %p216 = pneg %p59
      $region34: #{up_forward.3} parent=27 // pred_check_branch
        %218 = sbr.rel (%p216) target = $region36
      $region35: #{up_forward.3} parent=27 // pred_region
        %p219 = scmp.lt.s32.totalorder %s13, 1
        %s220 = scalar_select %p219, %s13, 1
        %s221 = smul.addr %s220, 3
        %s222 = smul.addr %s221, 8
        %s223 = scalar_lea.vmem %s1, %s222
      $region36: #{up_forward.3} parent=27 // pred_fallthru
        _
    $region28: #{up_forward.3} parent=5 // pred_fallthru
      _
    %p224 = scmp.le.s32.totalorder 1, %s13
    %p225 = scmp.lt.s32.totalorder %s13, 3
    %p226 = pnand %p224, %p225
    %p227 = pneg %p226
    // Predicated region
    $region37: #{up_forward.3} parent=5 // pred_check
      _
    $region38: #{up_forward.3} parent=5 // pred_check_branch
      %229 = sbr.rel (%p226) target = $region40
    $region39: #{up_forward.3} parent=5 // pred_region
      %s230 = ssub.s32 %s13, 1
      %p231 = scmp.lt.s32.totalorder %s18, 1
      %s232 = scalar_select %p231, %s18, 1
      %s233 = smul.addr %s232, 3
      %s234 = smul.addr %s233, 8
      %s235 = scalar_lea.vmem %s0, %s234
      %p236 = pneg %p39
      %p237 = pneg %p36
      %p238 = scmp.lt.s32.totalorder %s18, 1
      %s239 = scalar_select %p238, %s18, 1
      %s240 = smul.addr %s239, 3
      %s241 = smul.addr %s240, 8
      %s242 = scalar_lea.vmem %s1, %s241
      %p243 = pneg %p65
      %p244 = pneg %p62
      %p245 = pneg %p86
      %p246 = pneg %p83
      %p247 = pneg %p107
      %p248 = pneg %p104
      %p249 = pneg %p128
      %p250 = pneg %p125
      %p251 = pneg %p154
      %p252 = pneg %p151
      %p253 = scmp.lt.s32.totalorder %s18, 1
      %s254 = scalar_select %p253, %s18, 1
      %s255 = smul.addr %s254, 2
      %s256 = smul.addr %s255, 8
      %s257 = scalar_lea.vmem %s5, %s256
      %p258 = pneg %p180
      %p259 = pneg %p177
      %p260 = scmp.lt.s32.totalorder %s18, 1
      %s261 = scalar_select %p260, %s18, 1
      %s262 = smul.addr %s261, 2
      %s263 = scalar_lea.vmem %s6, %s262
      %p264 = scmp.lt.s32.totalorder %s18, 1
      %s265 = scalar_select %p264, %s18, 1
      %s266 = smul.addr %s265, 3
      %s267 = smul.addr %s266, 8
      %s268 = scalar_lea.vmem %s0, %s267
      %p269 = scmp.lt.s32.totalorder %s18, 1
      %s270 = scalar_select %p269, %s18, 1
      %s271 = smul.addr %s270, 3
      %s272 = smul.addr %s271, 8
      %s273 = scalar_lea.vmem %s1, %s272
      %p274 = scmp.lt.s32.totalorder %s18, 1
      %s275 = scalar_select %p274, %s18, 1
      %s276 = smul.addr %s275, 2
      %s277 = smul.addr %s276, 8
      %s278 = scalar_lea.vmem %s5, %s277
      %p279 = scmp.lt.s32.totalorder %s18, 1
      %s280 = scalar_select %p279, %s18, 1
      %s281 = smul.addr %s280, 2
      %s282 = scalar_lea.vmem %s6, %s281
      %v284 = vld [vmem:[%s268] sm:$0xff]
      %v285 = vld [vmem:[%s268 + $0x8] sm:$0xff]
      %v286 = vpack.c.bf16 %v285, %v284
      %v287 = vld [vmem:[%s273] sm:$0xff]
      %v288 = vld [vmem:[%s273 + $0x8] sm:$0xff]
      %v289 = vpack.c.bf16 %v288, %v287
      %v290 = vld [vmem:[%s2] sm:$0xf]
      %v291 = vld [vmem:[%s2 + $0x4] sm:$0xf]
      %v292 = vld [vmem:[%s2 + $0x8] sm:$0xf]
      %v293 = vld [vmem:[%s2 + $0xc] sm:$0xf]
      %v294 = vld [vmem:[%s2 + $0x10] sm:$0xf]
      %v295 = vld [vmem:[%s2 + $0x14] sm:$0xf]
      %v296 = vld [vmem:[%s2 + $0x18] sm:$0xf]
      %v297 = vld [vmem:[%s2 + $0x1c] sm:$0xf]
      %v298 = vld [vmem:[%s3] sm:$0xf]
      %v299 = vld [vmem:[%s3 + $0x4] sm:$0xf]
      %v300 = vld [vmem:[%s3 + $0x8] sm:$0xf]
      %v301 = vld [vmem:[%s3 + $0xc] sm:$0xf]
      %v302 = vld [vmem:[%s3 + $0x10] sm:$0xf]
      %v303 = vld [vmem:[%s3 + $0x14] sm:$0xf]
      %v304 = vld [vmem:[%s3 + $0x18] sm:$0xf]
      %v305 = vld [vmem:[%s3 + $0x1c] sm:$0xf]
      %v314 = vunpack.c.l.b16 %v298
      %v315 = vunpack.c.l.b16 %v299
      %v316 = vunpack.c.l.b16 %v300
      %v317 = vunpack.c.l.b16 %v301
      %v318 = vunpack.c.l.b16 %v302
      %v319 = vunpack.c.l.b16 %v303
      %v320 = vunpack.c.l.b16 %v304
      %v321 = vunpack.c.l.b16 %v305
      %v322 = vpack.c.b16 %v315, %v314
      %v323 = vpack.c.b16 %v317, %v316
      %v324 = vpack.c.b16 %v319, %v318
      %v325 = vpack.c.b16 %v321, %v320
      %vm330 = vcmask 523264
      %v332 = vsel %vm330, %v289, 0
      %334 = vmatprep.subr.bf16.mxu0 0
      %335 = vmatpush1.bf16.msra.mxu0 %v322
      %336 = vmatprep.subr.bf16.mxu0 0
      %337 = vmatpush1.bf16.msra.mxu0 %v323
      %338 = vmatprep.subr.bf16.mxu0 0
      %339 = vmatpush1.bf16.msra.mxu0 %v324
      %340 = vmatprep.subr.bf16.mxu0 0
      %341 = vmatpush1.bf16.msra.mxu0 %v325
      %342 = vmatprep.subr.bf16.mxu0 0
      %343 = vmatpush1.bf16.msra.mxu0 0
      %344 = vmatprep.subr.bf16.mxu0 0
      %345 = vmatpush1.bf16.msra.mxu0 0
      %346 = vmatprep.subr.bf16.mxu0 0
      %347 = vmatpush1.bf16.msra.mxu0 0
      %348 = vmatprep.subr.bf16.mxu0 0
      %349 = vmatpush1.bf16.msra.mxu0 0
      %350 = vmatprep.subr.bf16.mxu0 0
      %351 = vmatpush1.bf16.msra.mxu0 0
      %352 = vmatprep.subr.bf16.mxu0 0
      %353 = vmatpush1.bf16.msra.mxu0 0
      %354 = vmatprep.subr.bf16.mxu0 0
      %355 = vmatpush1.bf16.msra.mxu0 0
      %356 = vmatprep.subr.bf16.mxu0 0
      %357 = vmatpush1.bf16.msra.mxu0 0
      %358 = vmatprep.subr.bf16.mxu0 0
      %359 = vmatpush1.bf16.msra.mxu0 0
      %360 = vmatprep.subr.bf16.mxu0 0
      %361 = vmatpush1.bf16.msra.mxu0 0
      %362 = vmatprep.subr.bf16.mxu0 0
      %363 = vmatpush1.bf16.msra.mxu0 0
      %364 = vmatprep.subr.bf16.mxu0 0
      %365 = vmatpush1.bf16.msra.mxu0 0
      %366 = vmatprep.mubr.bf16.mxu0 0
      %367 = vmatmul.mubr.bf16.gmra.mrb[0].mxu0 %v332
      %v368 = vpop.f32.mrb[0].mxu0
      %v369 = vadd.f32 0.0, %v368
      %v370 = vpop.f32.mrb[0].mxu0
      %v371 = vpop.f32.mrb[0].mxu0
      %v372 = vadd.f32 0.0, %v371
      %v373 = vpop.f32.mrb[0].mxu0
      %374 = vdwg.mxu0
      %v383 = vunpack.c.l.b16 %v290
      %v384 = vunpack.c.l.b16 %v291
      %v385 = vunpack.c.l.b16 %v292
      %v386 = vunpack.c.l.b16 %v293
      %v387 = vunpack.c.l.b16 %v294
      %v388 = vunpack.c.l.b16 %v295
      %v389 = vunpack.c.l.b16 %v296
      %v390 = vunpack.c.l.b16 %v297
      %v391 = vpack.c.b16 %v384, %v383
      %v392 = vpack.c.b16 %v386, %v385
      %v393 = vpack.c.b16 %v388, %v387
      %v394 = vpack.c.b16 %v390, %v389
      %v400 = vsel %vm330, %v286, 0
      %402 = vmatprep.subr.bf16.mxu0 0
      %403 = vmatpush1.bf16.msra.mxu0 %v391
      %404 = vmatprep.subr.bf16.mxu0 0
      %405 = vmatpush1.bf16.msra.mxu0 %v392
      %406 = vmatprep.subr.bf16.mxu0 0
      %407 = vmatpush1.bf16.msra.mxu0 %v393
      %408 = vmatprep.subr.bf16.mxu0 0
      %409 = vmatpush1.bf16.msra.mxu0 %v394
      %410 = vmatprep.subr.bf16.mxu0 0
      %411 = vmatpush1.bf16.msra.mxu0 0
      %412 = vmatprep.subr.bf16.mxu0 0
      %413 = vmatpush1.bf16.msra.mxu0 0
      %414 = vmatprep.subr.bf16.mxu0 0
      %415 = vmatpush1.bf16.msra.mxu0 0
      %416 = vmatprep.subr.bf16.mxu0 0
      %417 = vmatpush1.bf16.msra.mxu0 0
      %418 = vmatprep.subr.bf16.mxu0 0
      %419 = vmatpush1.bf16.msra.mxu0 0
      %420 = vmatprep.subr.bf16.mxu0 0
      %421 = vmatpush1.bf16.msra.mxu0 0
      %422 = vmatprep.subr.bf16.mxu0 0
      %423 = vmatpush1.bf16.msra.mxu0 0
      %424 = vmatprep.subr.bf16.mxu0 0
      %425 = vmatpush1.bf16.msra.mxu0 0
      %426 = vmatprep.subr.bf16.mxu0 0
      %427 = vmatpush1.bf16.msra.mxu0 0
      %428 = vmatprep.subr.bf16.mxu0 0
      %429 = vmatpush1.bf16.msra.mxu0 0
      %430 = vmatprep.subr.bf16.mxu0 0
      %431 = vmatpush1.bf16.msra.mxu0 0
      %432 = vmatprep.subr.bf16.mxu0 0
      %433 = vmatpush1.bf16.msra.mxu0 0
      %434 = vmatprep.mubr.bf16.mxu0 0
      %435 = vmatmul.mubr.bf16.gmra.mrb[0].mxu0 %v400
      %v436 = vpop.f32.mrb[0].mxu0
      %v437 = vadd.f32 %v369, %v436
      %v438 = vpop.f32.mrb[0].mxu0
      %v439 = vpop.f32.mrb[0].mxu0
      %v440 = vadd.f32 %v372, %v439
      %v441 = vpop.f32.mrb[0].mxu0
      %442 = vdwg.mxu0
      %v443 = vld [vmem:[%s268 + $0x1] sm:$0xff]
      %v444 = vld [vmem:[%s268 + $0x9] sm:$0xff]
      %v445 = vpack.c.bf16 %v444, %v443
      %v446 = vld [vmem:[%s273 + $0x1] sm:$0xff]
      %v447 = vld [vmem:[%s273 + $0x9] sm:$0xff]
      %v448 = vpack.c.bf16 %v447, %v446
      %s449 = scalar_lea.vmem %s2, 32
      %v450 = vld [vmem:[%s449] sm:$0xf]
      %v451 = vld [vmem:[%s449 + $0x4] sm:$0xf]
      %v452 = vld [vmem:[%s449 + $0x8] sm:$0xf]
      %v453 = vld [vmem:[%s449 + $0xc] sm:$0xf]
      %v454 = vld [vmem:[%s449 + $0x10] sm:$0xf]
      %v455 = vld [vmem:[%s449 + $0x14] sm:$0xf]
      %v456 = vld [vmem:[%s449 + $0x18] sm:$0xf]
      %v457 = vld [vmem:[%s449 + $0x1c] sm:$0xf]
      %s458 = scalar_lea.vmem %s3, 32
      %v459 = vld [vmem:[%s458] sm:$0xf]
      %v460 = vld [vmem:[%s458 + $0x4] sm:$0xf]
      %v461 = vld [vmem:[%s458 + $0x8] sm:$0xf]
      %v462 = vld [vmem:[%s458 + $0xc] sm:$0xf]
      %v463 = vld [vmem:[%s458 + $0x10] sm:$0xf]
      %v464 = vld [vmem:[%s458 + $0x14] sm:$0xf]
      %v465 = vld [vmem:[%s458 + $0x18] sm:$0xf]
      %v466 = vld [vmem:[%s458 + $0x1c] sm:$0xf]
      %v475 = vunpack.c.l.b16 %v459
      %v476 = vunpack.c.l.b16 %v460
      %v477 = vunpack.c.l.b16 %v461
      %v478 = vunpack.c.l.b16 %v462
      %v479 = vunpack.c.l.b16 %v463
      %v480 = vunpack.c.l.b16 %v464
      %v481 = vunpack.c.l.b16 %v465
      %v482 = vunpack.c.l.b16 %v466
      %v483 = vpack.c.b16 %v476, %v475
      %v484 = vpack.c.b16 %v478, %v477
      %v485 = vpack.c.b16 %v480, %v479
      %v486 = vpack.c.b16 %v482, %v481
      %v492 = vsel %vm330, %v448, 0
      %494 = vmatprep.subr.bf16.mxu0 0
      %495 = vmatpush1.bf16.msra.mxu0 %v483
      %496 = vmatprep.subr.bf16.mxu0 0
      %497 = vmatpush1.bf16.msra.mxu0 %v484
      %498 = vmatprep.subr.bf16.mxu0 0
      %499 = vmatpush1.bf16.msra.mxu0 %v485
      %500 = vmatprep.subr.bf16.mxu0 0
      %501 = vmatpush1.bf16.msra.mxu0 %v486
      %502 = vmatprep.subr.bf16.mxu0 0
      %503 = vmatpush1.bf16.msra.mxu0 0
      %504 = vmatprep.subr.bf16.mxu0 0
      %505 = vmatpush1.bf16.msra.mxu0 0
      %506 = vmatprep.subr.bf16.mxu0 0
      %507 = vmatpush1.bf16.msra.mxu0 0
      %508 = vmatprep.subr.bf16.mxu0 0
      %509 = vmatpush1.bf16.msra.mxu0 0
      %510 = vmatprep.subr.bf16.mxu0 0
      %511 = vmatpush1.bf16.msra.mxu0 0
      %512 = vmatprep.subr.bf16.mxu0 0
      %513 = vmatpush1.bf16.msra.mxu0 0
      %514 = vmatprep.subr.bf16.mxu0 0
      %515 = vmatpush1.bf16.msra.mxu0 0
      %516 = vmatprep.subr.bf16.mxu0 0
      %517 = vmatpush1.bf16.msra.mxu0 0
      %518 = vmatprep.subr.bf16.mxu0 0
      %519 = vmatpush1.bf16.msra.mxu0 0
      %520 = vmatprep.subr.bf16.mxu0 0
      %521 = vmatpush1.bf16.msra.mxu0 0
      %522 = vmatprep.subr.bf16.mxu0 0
      %523 = vmatpush1.bf16.msra.mxu0 0
      %524 = vmatprep.subr.bf16.mxu0 0
      %525 = vmatpush1.bf16.msra.mxu0 0
      %526 = vmatprep.mubr.bf16.mxu0 0
      %527 = vmatmul.mubr.bf16.gmra.mrb[0].mxu0 %v492
      %v528 = vpop.f32.mrb[0].mxu0
      %v529 = vadd.f32 0.0, %v528
      %v530 = vpop.f32.mrb[0].mxu0
      %v531 = vpop.f32.mrb[0].mxu0
      %v532 = vadd.f32 0.0, %v531
      %v533 = vpop.f32.mrb[0].mxu0
      %534 = vdwg.mxu0
      %v543 = vunpack.c.l.b16 %v450
      %v544 = vunpack.c.l.b16 %v451
      %v545 = vunpack.c.l.b16 %v452
      %v546 = vunpack.c.l.b16 %v453
      %v547 = vunpack.c.l.b16 %v454
      %v548 = vunpack.c.l.b16 %v455
      %v549 = vunpack.c.l.b16 %v456
      %v550 = vunpack.c.l.b16 %v457
      %v551 = vpack.c.b16 %v544, %v543
      %v552 = vpack.c.b16 %v546, %v545
      %v553 = vpack.c.b16 %v548, %v547
      %v554 = vpack.c.b16 %v550, %v549
      %v560 = vsel %vm330, %v445, 0
      %562 = vmatprep.subr.bf16.mxu0 0
      %563 = vmatpush1.bf16.msra.mxu0 %v551
      %564 = vmatprep.subr.bf16.mxu0 0
      %565 = vmatpush1.bf16.msra.mxu0 %v552
      %566 = vmatprep.subr.bf16.mxu0 0
      %567 = vmatpush1.bf16.msra.mxu0 %v553
      %568 = vmatprep.subr.bf16.mxu0 0
      %569 = vmatpush1.bf16.msra.mxu0 %v554
      %570 = vmatprep.subr.bf16.mxu0 0
      %571 = vmatpush1.bf16.msra.mxu0 0
      %572 = vmatprep.subr.bf16.mxu0 0
      %573 = vmatpush1.bf16.msra.mxu0 0
      %574 = vmatprep.subr.bf16.mxu0 0
      %575 = vmatpush1.bf16.msra.mxu0 0
      %576 = vmatprep.subr.bf16.mxu0 0
      %577 = vmatpush1.bf16.msra.mxu0 0
      %578 = vmatprep.subr.bf16.mxu0 0
      %579 = vmatpush1.bf16.msra.mxu0 0
      %580 = vmatprep.subr.bf16.mxu0 0
      %581 = vmatpush1.bf16.msra.mxu0 0
      %582 = vmatprep.subr.bf16.mxu0 0
      %583 = vmatpush1.bf16.msra.mxu0 0
      %584 = vmatprep.subr.bf16.mxu0 0
      %585 = vmatpush1.bf16.msra.mxu0 0
      %586 = vmatprep.subr.bf16.mxu0 0
      %587 = vmatpush1.bf16.msra.mxu0 0
      %588 = vmatprep.subr.bf16.mxu0 0
      %589 = vmatpush1.bf16.msra.mxu0 0
      %590 = vmatprep.subr.bf16.mxu0 0
      %591 = vmatpush1.bf16.msra.mxu0 0
      %592 = vmatprep.subr.bf16.mxu0 0
      %593 = vmatpush1.bf16.msra.mxu0 0
      %594 = vmatprep.mubr.bf16.mxu0 0
      %595 = vmatmul.mubr.bf16.gmra.mrb[0].mxu0 %v560
      %v596 = vpop.f32.mrb[0].mxu0
      %v597 = vadd.f32 %v529, %v596
      %v598 = vpop.f32.mrb[0].mxu0
      %v599 = vpop.f32.mrb[0].mxu0
      %v600 = vadd.f32 %v532, %v599
      %v601 = vpop.f32.mrb[0].mxu0
      %602 = vdwg.mxu0
      %v603 = vadd.f32 %v437, %v597
      %v604 = vadd.f32 %v440, %v600
      %v605 = vld [vmem:[%s268 + $0x2] sm:$0xff]
      %v606 = vld [vmem:[%s268 + $0xa] sm:$0xff]
      %v607 = vpack.c.bf16 %v606, %v605
      %v608 = vld [vmem:[%s273 + $0x2] sm:$0xff]
      %v609 = vld [vmem:[%s273 + $0xa] sm:$0xff]
      %v610 = vpack.c.bf16 %v609, %v608
      %s611 = scalar_lea.vmem %s2, 64
      %v612 = vld [vmem:[%s611] sm:$0xf]
      %v613 = vld [vmem:[%s611 + $0x4] sm:$0xf]
      %v614 = vld [vmem:[%s611 + $0x8] sm:$0xf]
      %v615 = vld [vmem:[%s611 + $0xc] sm:$0xf]
      %v616 = vld [vmem:[%s611 + $0x10] sm:$0xf]
      %v617 = vld [vmem:[%s611 + $0x14] sm:$0xf]
      %v618 = vld [vmem:[%s611 + $0x18] sm:$0xf]
      %v619 = vld [vmem:[%s611 + $0x1c] sm:$0xf]
      %s620 = scalar_lea.vmem %s3, 64
      %v621 = vld [vmem:[%s620] sm:$0xf]
      %v622 = vld [vmem:[%s620 + $0x4] sm:$0xf]
      %v623 = vld [vmem:[%s620 + $0x8] sm:$0xf]
      %v624 = vld [vmem:[%s620 + $0xc] sm:$0xf]
      %v625 = vld [vmem:[%s620 + $0x10] sm:$0xf]
      %v626 = vld [vmem:[%s620 + $0x14] sm:$0xf]
      %v627 = vld [vmem:[%s620 + $0x18] sm:$0xf]
      %v628 = vld [vmem:[%s620 + $0x1c] sm:$0xf]
      %v637 = vunpack.c.l.b16 %v621
      %v638 = vunpack.c.l.b16 %v622
      %v639 = vunpack.c.l.b16 %v623
      %v640 = vunpack.c.l.b16 %v624
      %v641 = vunpack.c.l.b16 %v625
      %v642 = vunpack.c.l.b16 %v626
      %v643 = vunpack.c.l.b16 %v627
      %v644 = vunpack.c.l.b16 %v628
      %v645 = vpack.c.b16 %v638, %v637
      %v646 = vpack.c.b16 %v640, %v639
      %v647 = vpack.c.b16 %v642, %v641
      %v648 = vpack.c.b16 %v644, %v643
      %v654 = vsel %vm330, %v610, 0
      %656 = vmatprep.subr.bf16.mxu0 0
      %657 = vmatpush1.bf16.msra.mxu0 %v645
      %658 = vmatprep.subr.bf16.mxu0 0
      %659 = vmatpush1.bf16.msra.mxu0 %v646
      %660 = vmatprep.subr.bf16.mxu0 0
      %661 = vmatpush1.bf16.msra.mxu0 %v647
      %662 = vmatprep.subr.bf16.mxu0 0
      %663 = vmatpush1.bf16.msra.mxu0 %v648
      %664 = vmatprep.subr.bf16.mxu0 0
      %665 = vmatpush1.bf16.msra.mxu0 0
      %666 = vmatprep.subr.bf16.mxu0 0
      %667 = vmatpush1.bf16.msra.mxu0 0
      %668 = vmatprep.subr.bf16.mxu0 0
      %669 = vmatpush1.bf16.msra.mxu0 0
      %670 = vmatprep.subr.bf16.mxu0 0
      %671 = vmatpush1.bf16.msra.mxu0 0
      %672 = vmatprep.subr.bf16.mxu0 0
      %673 = vmatpush1.bf16.msra.mxu0 0
      %674 = vmatprep.subr.bf16.mxu0 0
      %675 = vmatpush1.bf16.msra.mxu0 0
      %676 = vmatprep.subr.bf16.mxu0 0
      %677 = vmatpush1.bf16.msra.mxu0 0
      %678 = vmatprep.subr.bf16.mxu0 0
      %679 = vmatpush1.bf16.msra.mxu0 0
      %680 = vmatprep.subr.bf16.mxu0 0
      %681 = vmatpush1.bf16.msra.mxu0 0
      %682 = vmatprep.subr.bf16.mxu0 0
      %683 = vmatpush1.bf16.msra.mxu0 0
      %684 = vmatprep.subr.bf16.mxu0 0
      %685 = vmatpush1.bf16.msra.mxu0 0
      %686 = vmatprep.subr.bf16.mxu0 0
      %687 = vmatpush1.bf16.msra.mxu0 0
      %688 = vmatprep.mubr.bf16.mxu0 0
      %689 = vmatmul.mubr.bf16.gmra.mrb[0].mxu0 %v654
      %v690 = vpop.f32.mrb[0].mxu0
      %v691 = vadd.f32 0.0, %v690
      %v692 = vpop.f32.mrb[0].mxu0
      %v693 = vpop.f32.mrb[0].mxu0
      %v694 = vadd.f32 0.0, %v693
      %v695 = vpop.f32.mrb[0].mxu0
      %696 = vdwg.mxu0
      %v705 = vunpack.c.l.b16 %v612
      %v706 = vunpack.c.l.b16 %v613
      %v707 = vunpack.c.l.b16 %v614
      %v708 = vunpack.c.l.b16 %v615
      %v709 = vunpack.c.l.b16 %v616
      %v710 = vunpack.c.l.b16 %v617
      %v711 = vunpack.c.l.b16 %v618
      %v712 = vunpack.c.l.b16 %v619
      %v713 = vpack.c.b16 %v706, %v705
      %v714 = vpack.c.b16 %v708, %v707
      %v715 = vpack.c.b16 %v710, %v709
      %v716 = vpack.c.b16 %v712, %v711
      %v722 = vsel %vm330, %v607, 0
      %724 = vmatprep.subr.bf16.mxu0 0
      %725 = vmatpush1.bf16.msra.mxu0 %v713
      %726 = vmatprep.subr.bf16.mxu0 0
      %727 = vmatpush1.bf16.msra.mxu0 %v714
      %728 = vmatprep.subr.bf16.mxu0 0
      %729 = vmatpush1.bf16.msra.mxu0 %v715
      %730 = vmatprep.subr.bf16.mxu0 0
      %731 = vmatpush1.bf16.msra.mxu0 %v716
      %732 = vmatprep.subr.bf16.mxu0 0
      %733 = vmatpush1.bf16.msra.mxu0 0
      %734 = vmatprep.subr.bf16.mxu0 0
      %735 = vmatpush1.bf16.msra.mxu0 0
      %736 = vmatprep.subr.bf16.mxu0 0
      %737 = vmatpush1.bf16.msra.mxu0 0
      %738 = vmatprep.subr.bf16.mxu0 0
      %739 = vmatpush1.bf16.msra.mxu0 0
      %740 = vmatprep.subr.bf16.mxu0 0
      %741 = vmatpush1.bf16.msra.mxu0 0
      %742 = vmatprep.subr.bf16.mxu0 0
      %743 = vmatpush1.bf16.msra.mxu0 0
      %744 = vmatprep.subr.bf16.mxu0 0
      %745 = vmatpush1.bf16.msra.mxu0 0
      %746 = vmatprep.subr.bf16.mxu0 0
      %747 = vmatpush1.bf16.msra.mxu0 0
      %748 = vmatprep.subr.bf16.mxu0 0
      %749 = vmatpush1.bf16.msra.mxu0 0
      %750 = vmatprep.subr.bf16.mxu0 0
      %751 = vmatpush1.bf16.msra.mxu0 0
      %752 = vmatprep.subr.bf16.mxu0 0
      %753 = vmatpush1.bf16.msra.mxu0 0
      %754 = vmatprep.subr.bf16.mxu0 0
      %755 = vmatpush1.bf16.msra.mxu0 0
      %756 = vmatprep.mubr.bf16.mxu0 0
      %757 = vmatmul.mubr.bf16.gmra.mrb[0].mxu0 %v722
      %v758 = vpop.f32.mrb[0].mxu0
      %v759 = vadd.f32 %v691, %v758
      %v760 = vpop.f32.mrb[0].mxu0
      %v761 = vpop.f32.mrb[0].mxu0
      %v762 = vadd.f32 %v694, %v761
      %v763 = vpop.f32.mrb[0].mxu0
      %764 = vdwg.mxu0
      %v765 = vadd.f32 %v603, %v759
      %v766 = vadd.f32 %v604, %v762
      %767 = vst [vmem:[%s278] sm:$0xff] %v765
      %768 = vst [vmem:[%s278 + $0x8] sm:$0xff] %v766
      %v769 = vadd.f32 %v765, %v766
      %v770 = vrot.slane %v769, 4
      %v771 = vadd.f32 %v769, %v770
      %v772 = vrot.slane %v771, 2
      %v773 = vadd.f32 %v771, %v772
      %v774 = vrot.slane %v773, 1
      %v775 = vadd.f32 %v773, %v774
      %v776 = vmul.f32 %v765, %v765
      %v777 = vmul.f32 %v766, %v766
      %v778 = vadd.f32 %v776, %v777
      %v779 = vrot.slane %v778, 4
      %v780 = vadd.f32 %v778, %v779
      %v781 = vrot.slane %v780, 2
      %v782 = vadd.f32 %v780, %v781
      %v783 = vrot.slane %v782, 1
      %v784 = vadd.f32 %v782, %v783
      %vm785 = vcmask 1040384
      %v786 = vsel %vm785, %v775, %v784
      %v787 = vld [vmem:[%s4] sm:$0xff]
      %v788 = vld [vmem:[%s4 + $0x8] sm:$0xff]
      %v789 = vld [vmem:[%s4 + $0x10] sm:$0xff]
      %v790 = vld [vmem:[%s4 + $0x18] sm:$0xff]
      %v791 = vld [vmem:[%s4 + $0x20] sm:$0xff]
      %v792 = vld [vmem:[%s4 + $0x28] sm:$0xff]
      %v793 = vld [vmem:[%s4 + $0x30] sm:$0xff]
      %v794 = vld [vmem:[%s4 + $0x38] sm:$0xff]
      %v795 = vld [vmem:[%s4 + $0x40] sm:$0xff]
      %v796 = vld [vmem:[%s4 + $0x48] sm:$0xff]
      %v797 = vld [vmem:[%s4 + $0x50] sm:$0xff]
      %v798 = vld [vmem:[%s4 + $0x58] sm:$0xff]
      %v799 = vld [vmem:[%s4 + $0x60] sm:$0xff]
      %v800 = vld [vmem:[%s4 + $0x68] sm:$0xff]
      %v801 = vld [vmem:[%s4 + $0x70] sm:$0xff]
      %v802 = vld [vmem:[%s4 + $0x78] sm:$0xff]
      %803 = vmatprep.subr.mxu0 0.0
      %804 = vmatpush1.msra.mxu0 %v787
      %805 = vmatprep.subr.mxu0 0.0
      %806 = vmatpush1.msra.mxu0 %v788
      %807 = vmatprep.subr.mxu0 0.0
      %808 = vmatpush1.msra.mxu0 %v789
      %809 = vmatprep.subr.mxu0 0.0
      %810 = vmatpush1.msra.mxu0 %v790
      %811 = vmatprep.subr.mxu0 0.0
      %812 = vmatpush1.msra.mxu0 %v791
      %813 = vmatprep.subr.mxu0 0.0
      %814 = vmatpush1.msra.mxu0 %v792
      %815 = vmatprep.subr.mxu0 0.0
      %816 = vmatpush1.msra.mxu0 %v793
      %817 = vmatprep.subr.mxu0 0.0
      %818 = vmatpush1.msra.mxu0 %v794
      %819 = vmatprep.subr.mxu0 0.0
      %820 = vmatpush1.msra.mxu0 %v795
      %821 = vmatprep.subr.mxu0 0.0
      %822 = vmatpush1.msra.mxu0 %v796
      %823 = vmatprep.subr.mxu0 0.0
      %824 = vmatpush1.msra.mxu0 %v797
      %825 = vmatprep.subr.mxu0 0.0
      %826 = vmatpush1.msra.mxu0 %v798
      %827 = vmatprep.subr.mxu0 0.0
      %828 = vmatpush1.msra.mxu0 %v799
      %829 = vmatprep.subr.mxu0 0.0
      %830 = vmatpush1.msra.mxu0 %v800
      %831 = vmatprep.subr.mxu0 0.0
      %832 = vmatpush1.msra.mxu0 %v801
      %833 = vmatprep.subr.mxu0 0.0
      %834 = vmatpush1.msra.mxu0 %v802
      %835 = vmatprep.subr.mxu0 0.0
      %836 = vmatpush1.msra.mxu0 0.0
      %837 = vmatprep.subr.mxu0 0.0
      %838 = vmatpush1.msra.mxu0 0.0
      %839 = vmatprep.subr.mxu0 0.0
      %840 = vmatpush1.msra.mxu0 0.0
      %841 = vmatprep.subr.mxu0 0.0
      %842 = vmatpush1.msra.mxu0 0.0
      %843 = vmatprep.subr.mxu0 0.0
      %844 = vmatpush1.msra.mxu0 0.0
      %845 = vmatprep.subr.mxu0 0.0
      %846 = vmatpush1.msra.mxu0 0.0
      %847 = vmatprep.subr.mxu0 0.0
      %848 = vmatpush1.msra.mxu0 0.0
      %849 = vmatprep.subr.mxu0 0.0
      %850 = vmatpush1.msra.mxu0 0.0
      %851 = vmatprep.subr.mxu0 0.0
      %852 = vmatpush1.msra.mxu0 0.0
      %853 = vmatprep.subr.mxu0 0.0
      %854 = vmatpush1.msra.mxu0 0.0
      %855 = vmatprep.subr.mxu0 0.0
      %856 = vmatpush1.msra.mxu0 0.0
      %857 = vmatprep.subr.mxu0 0.0
      %858 = vmatpush1.msra.mxu0 0.0
      %859 = vmatprep.subr.mxu0 0.0
      %860 = vmatpush1.msra.mxu0 0.0
      %861 = vmatprep.subr.mxu0 0.0
      %862 = vmatpush1.msra.mxu0 0.0
      %863 = vmatprep.subr.mxu0 0.0
      %864 = vmatpush1.msra.mxu0 0.0
      %865 = vmatprep.subr.mxu0 0.0
      %866 = vmatpush1.msra.mxu0 0.0
      %867 = vmatprep.mubr.f32.mxu0 0.0
      %868 = vmatmul.mubr.f32.gmra.mrb[0].mxu0 %v786
      %v869 = vpop.f32.mrb[0].mxu0
      %v870 = vadd.f32 0.0, %v869
      %v871 = vpop.f32.mrb[0].mxu0
      %872 = vdwg.mxu0
      %vm873 = vcmask 58368
      %874 = vst.msk [vmem:[%s282] sm:$0x3] %vm873, %v870
      %p875 = scmp.lt.s32.totalorder %s18, 1
      %s876 = scalar_select %p875, %s18, 1
      %s877 = smul.addr %s876, 2
      %s878 = smul.addr %s877, 8
      %s879 = scalar_lea.vmem %s5, %s878
      %p880 = scmp.lt.s32.totalorder %s18, 1
      %s881 = scalar_select %p880, %s18, 1
      %s882 = smul.addr %s881, 2
      %s883 = scalar_lea.vmem %s6, %s882
      // Predicated region
      $region41: #{up_forward.3} parent=39 // pred_check
        %p884 = pneg %p151
      $region42: #{up_forward.3} parent=39 // pred_check_branch
        %886 = sbr.rel (%p884) target = $region44
      $region43: #{up_forward.3} parent=39 // pred_region
        _
      $region44: #{up_forward.3} parent=39 // pred_fallthru
        _
      // Predicated region
      $region45: #{up_forward.3} parent=39 // pred_check
        %p887 = pneg %p177
      $region46: #{up_forward.3} parent=39 // pred_check_branch
        %889 = sbr.rel (%p887) target = $region48
      $region47: #{up_forward.3} parent=39 // pred_region
        _
      $region48: #{up_forward.3} parent=39 // pred_fallthru
        _
    $region40: #{up_forward.3} parent=5 // pred_fallthru
      _
    %p890 = scmp.le.s32.totalorder 2, %s13
    // Predicated region
    $region49: #{up_forward.3} parent=5 // pred_check
      %p891 = pneg %p890
    $region50: #{up_forward.3} parent=5 // pred_check_branch
      %893 = sbr.rel (%p891) target = $region52
    $region51: #{up_forward.3} parent=5 // pred_region
      %s894 = ssub.s32 %s13, 2
      // Predicated region
      $region53: #{up_forward.3} parent=51 // pred_check
        %p895 = pneg %p157
      $region54: #{up_forward.3} parent=51 // pred_check_branch
        %897 = sbr.rel (%p895) target = $region56
      $region55: #{up_forward.3} parent=51 // pred_region
        %p898 = scmp.lt.s32.totalorder %s19, 1
        %s899 = scalar_select %p898, %s19, 1
        %s900 = smul.addr %s899, 2
        %s901 = smul.addr %s900, 8
        %s902 = scalar_lea.vmem %s5, %s901
      $region56: #{up_forward.3} parent=51 // pred_fallthru
        _
      // Predicated region
      $region57: #{up_forward.3} parent=51 // pred_check
        %p903 = pneg %p183
      $region58: #{up_forward.3} parent=51 // pred_check_branch
        %905 = sbr.rel (%p903) target = $region60
      $region59: #{up_forward.3} parent=51 // pred_region
        %p906 = scmp.lt.s32.totalorder %s19, 1
        %s907 = scalar_select %p906, %s19, 1
        %s908 = smul.addr %s907, 2
        %s909 = scalar_lea.vmem %s6, %s908
      $region60: #{up_forward.3} parent=51 // pred_fallthru
        _
    $region52: #{up_forward.3} parent=5 // pred_fallthru
      _
  $region6: #{up_forward.3} parent=0 // loop_footer
    %s17 = sadd.s32 1, %s13
  $region7: #{up_forward.3} parent=0 // loop_footer_branch
    %12 = sbr.rel target = $region3
  $region8: #{up_forward.3} parent=0 // loop_exit
    _

// kernel: tile.23
$region0: #{tile.23}
  #allocation0 [shape = 's32[1]{0}', space=sflag, size = 0x4, scoped, tag = 'scoped memory for tile.23']
  %s0 = inlined_call_operand.vmem [shape: f32[8], index: 0, kind: input, shape index: {}]
  %s1 = inlined_call_operand.vmem [shape: f32[16,8], index: 1, kind: output, shape index: {}]
  // Predicated region
  $region2: #{tile.23} parent=0 // pred_check
    _
  $region3: #{tile.23} parent=0 // pred_check_branch
    %3 = sbr.rel (0) target = $region5
  $region4: #{tile.23} parent=0 // pred_region
    _
  $region5: #{tile.23} parent=0 // pred_fallthru
    _
  %v4 = vld [vmem:[%s0] ss:$0 sm:$0xff]
  %5 = vst [vmem:[%s1] sm:$0xff] %v4
  %s6 = scalar_lea.vmem %s1, 8
  %7 = vst [vmem:[%s6] sm:$0xff] %v4

// kernel: tile.24
$region0: #{tile.24}
  %s0 = inlined_call_operand.vmem [shape: f32[16,8], index: 0, kind: input, shape index: {}]
  %s1 = inlined_call_operand.vmem [shape: f32[1,128], index: 1, kind: output, shape index: {}]
  $region1: #{tile.24} parent=0
    #allocation0 [shape = 'u8[4096]{0}', space=vmem, size = 0x1000, scoped, tag = 'scoped mem for output reshape']
    %v2 = vld [vmem:[%s0] sm:$0x1]
    %vm3 = vcmask 64512
    %4 = vst.msk [vmem:[#allocation0] sm:$0x1] %vm3, %v2
    %s5 = scalar_lea.vmem %s0, 15
    %v6 = vld [vmem:[%s5] sm:$0x1]
    %7 = vrot.lane.b32.xlu0 %v6, 120
    %v8 = vpop.permute.xlu0 %7
    %vm9 = vcmask 1048512
    %10 = vst.msk [vmem:[#allocation0] sm:$0x1] %vm9, %v8
    %s11 = scalar_lea.vmem %s0, 14
    %v12 = vld [vmem:[%s11] sm:$0x1]
    %13 = vrot.lane.b32.xlu0 %v12, 112
    %v14 = vpop.permute.xlu0 %13
    %vm15 = vcmask 982912
    %16 = vst.msk [vmem:[#allocation0] sm:$0x1] %vm15, %v14
    %s17 = scalar_lea.vmem %s0, 13
    %v18 = vld [vmem:[%s17] sm:$0x1]
    %19 = vrot.lane.b32.xlu0 %v18, 104
    %v20 = vpop.permute.xlu0 %19
    %vm21 = vcmask 917312
    %22 = vst.msk [vmem:[#allocation0] sm:$0x1] %vm21, %v20
    %s23 = scalar_lea.vmem %s0, 12
    %v24 = vld [vmem:[%s23] sm:$0x1]
    %25 = vrot.lane.b32.xlu0 %v24, 96
    %v26 = vpop.permute.xlu0 %25
    %vm27 = vcmask 851712
    %28 = vst.msk [vmem:[#allocation0] sm:$0x1] %vm27, %v26
    %s29 = scalar_lea.vmem %s0, 11
    %v30 = vld [vmem:[%s29] sm:$0x1]
    %31 = vrot.lane.b32.xlu0 %v30, 88
    %v32 = vpop.permute.xlu0 %31
    %vm33 = vcmask 786112
    %34 = vst.msk [vmem:[#allocation0] sm:$0x1] %vm33, %v32
    %s35 = scalar_lea.vmem %s0, 10
    %v36 = vld [vmem:[%s35] sm:$0x1]
    %37 = vrot.lane.b32.xlu0 %v36, 80
    %v38 = vpop.permute.xlu0 %37
    %vm39 = vcmask 720512
    %40 = vst.msk [vmem:[#allocation0] sm:$0x1] %vm39, %v38
    %s41 = scalar_lea.vmem %s0, 9
    %v42 = vld [vmem:[%s41] sm:$0x1]
    %43 = vrot.lane.b32.xlu0 %v42, 72
    %v44 = vpop.permute.xlu0 %43
    %vm45 = vcmask 654912
    %46 = vst.msk [vmem:[#allocation0] sm:$0x1] %vm45, %v44
    %s47 = scalar_lea.vmem %s0, 8
    %v48 = vld [vmem:[%s47] sm:$0x1]
    %49 = vrot.lane.b32.xlu0 %v48, 64
    %v50 = vpop.permute.xlu0 %49
    %vm51 = vcmask 589312
    %52 = vst.msk [vmem:[#allocation0] sm:$0x1] %vm51, %v50
    %s53 = scalar_lea.vmem %s0, 7
    %v54 = vld [vmem:[%s53] sm:$0x1]
    %55 = vrot.lane.b32.xlu0 %v54, 56
    %v56 = vpop.permute.xlu0 %55
    %vm57 = vcmask 523712
    %58 = vst.msk [vmem:[#allocation0] sm:$0x1] %vm57, %v56
    %s59 = scalar_lea.vmem %s0, 6
    %v60 = vld [vmem:[%s59] sm:$0x1]
    %61 = vrot.lane.b32.xlu0 %v60, 48
    %v62 = vpop.permute.xlu0 %61
    %vm63 = vcmask 458112
    %64 = vst.msk [vmem:[#allocation0] sm:$0x1] %vm63, %v62
    %s65 = scalar_lea.vmem %s0, 5
    %v66 = vld [vmem:[%s65] sm:$0x1]
    %67 = vrot.lane.b32.xlu0 %v66, 40
    %v68 = vpop.permute.xlu0 %67
    %vm69 = vcmask 392512
    %70 = vst.msk [vmem:[#allocation0] sm:$0x1] %vm69, %v68
    %s71 = scalar_lea.vmem %s0, 4
    %v72 = vld [vmem:[%s71] sm:$0x1]
    %73 = vrot.lane.b32.xlu0 %v72, 32
    %v74 = vpop.permute.xlu0 %73
    %vm75 = vcmask 326912
    %76 = vst.msk [vmem:[#allocation0] sm:$0x1] %vm75, %v74
    %s77 = scalar_lea.vmem %s0, 3
    %v78 = vld [vmem:[%s77] sm:$0x1]
    %79 = vrot.lane.b32.xlu0 %v78, 24
    %v80 = vpop.permute.xlu0 %79
    %vm81 = vcmask 261312
    %82 = vst.msk [vmem:[#allocation0] sm:$0x1] %vm81, %v80
    %s83 = scalar_lea.vmem %s0, 2
    %v84 = vld [vmem:[%s83] sm:$0x1]
    %85 = vrot.lane.b32.xlu0 %v84, 16
    %v86 = vpop.permute.xlu0 %85
    %vm87 = vcmask 195712
    %88 = vst.msk [vmem:[#allocation0] sm:$0x1] %vm87, %v86
    %s89 = scalar_lea.vmem %s0, 1
    %v90 = vld [vmem:[%s89] sm:$0x1]
    %91 = vrot.lane.b32.xlu0 %v90, 8
    %v92 = vpop.permute.xlu0 %91
    %vm93 = vcmask 130112
    %94 = vst.msk [vmem:[#allocation0] sm:$0x1] %vm93, %v92
    %s96 = sshllo.u32 0, 1
    %v98 = vld [vmem:[#allocation0] sm:%s96]
    %s99 = sshllo.u32 0, 1
    %100 = vst [vmem:[%s1] sm:%s99] %v98

// kernel: up_forward.4
$region0: #{up_forward.4}
  #allocation0 [shape = 'u32[]', space=smem, size = 0x4, offset = 0x4, fixed_abs, tag = 'smem constant byte address 0x4 - core index']
  #allocation1 [shape = 'u32[144,128]{1,0:T(1,128)}', space=vmem, size = 0x12000, scoped, tag = 'internal scratch']
  %s0 = inlined_call_operand.vmem [shape: f32[2,18,128], index: 0, kind: input, shape index: {}]
  %s1 = inlined_call_operand.vmem [shape: f32[1,128], index: 1, kind: input, shape index: {}]
  %s2 = inlined_call_operand.vmem [shape: f32[1,128], index: 2, kind: input, shape index: {}]
  %s3 = inlined_call_operand.vmem [shape: bf16[3,128,128], index: 3, kind: input, shape index: {}]
  %s4 = inlined_call_operand.vmem [shape: f32[128,8], index: 4, kind: input, shape index: {}]
  %s5 = inlined_call_operand.vmem [shape: f32[2,16,128], index: 5, kind: output, shape index: {0}]
  %s6 = inlined_call_operand.vmem [shape: f32[2,2,8], index: 6, kind: output, shape index: {1}]
  %7 = xla_tuple %s5, %s6
  %s8 = sld [smem:[#allocation0]]
  $region61: #{up_forward.4} parent=0
    _
  %s10 = ssub.s32 1, %s8
  %s11 = scalar_select 0, %s10, %s8
  loop: start=0, step=1, limit=4
  $region2: #{up_forward.4} parent=0 // loop_pre_header
    _
  $region3: #{up_forward.4} parent=0 // loop_header
    %s13 = sphi 0, %s17
    %p14 = scmp.ge.s32.totalorder %s13, 4
    %s23 = sphi 0, %s25
    %s26 = sphi 0, %s23
    %s27 = sphi 0, %s26
    %s43 = sphi 0, %s27
    %s47 = sphi 0, %s47
    %s49 = sphi 0, %s47
    %s50 = sphi 0, %s49
    %s64 = sphi 0, %s50
    %s68 = sphi 0, %s68
    %s70 = sphi 0, %s68
    %s71 = sphi 0, %s70
    %s85 = sphi 0, %s71
    %s89 = sphi 0, %s89
    %s91 = sphi 0, %s89
    %s92 = sphi 0, %s91
    %s106 = sphi 0, %s92
    %s110 = sphi 0, %s110
    %s112 = sphi 0, %s110
    %s113 = sphi 0, %s112
    %s127 = sphi 0, %s113
    %s133 = sphi 0, %s135
    %s136 = sphi 0, %s133
    %s137 = sphi 0, %s136
    %s153 = sphi 0, %s137
    %s159 = sphi 0, %s161
    %s162 = sphi 0, %s159
    %s163 = sphi 0, %s162
    %s179 = sphi 0, %s163
  $region4: #{up_forward.4} parent=0 // loop_header_branch
    %16 = sbr.rel (%p14) target = $region8
  $region5: #{up_forward.4} parent=0 // loop_body
    %s18 = ssub.s32 %s13, 1
    %s19 = ssub.s32 %s13, 2
    %s20 = sadd.s32 %s13, 1
    %s21 = ssub.s32 %s13, %s20
    %p22 = scmp.eq.s32.totalorder %s21, 0
    %s24 = sadd.s32 %s23, 1
    %s25 = scalar_select %p22, %s23, %s24
    %p28 = pneg %p22
    %p29 = scmp.eq.s32.totalorder %s13, 1
    %p30 = por %p28, %p29
    %p31 = scmp.ne.s32.totalorder %s23, %s26
    %p32 = scmp.eq.s32.totalorder %s13, 0
    %p33 = por %p31, %p32
    %p34 = scmp.ne.s32.totalorder %s23, %s26
    %p35 = scmp.eq.s32.totalorder %s18, 1
    %p36 = por %p34, %p35
    %p37 = scmp.ne.s32.totalorder %s26, %s27
    %p38 = scmp.eq.s32.totalorder %s18, 0
    %p39 = por %p37, %p38
    %p40 = scmp.ne.s32.totalorder %s26, %s27
    %p41 = scmp.eq.s32.totalorder %s19, 1
    %p42 = por %p40, %p41
    %p44 = scmp.ne.s32.totalorder %s27, %s43
    %p45 = scmp.eq.s32.totalorder %s19, 0
    %p46 = por %p44, %p45
    %s48 = sadd.s32 %s47, 1
    %p51 = scmp.eq.s32.totalorder %s13, 1
    %p52 = scmp.ne.s32.totalorder %s47, %s49
    %p53 = scmp.eq.s32.totalorder %s13, 0
    %p54 = por %p52, %p53
    %p55 = scmp.ne.s32.totalorder %s47, %s49
    %p56 = scmp.eq.s32.totalorder %s18, 1
    %p57 = por %p55, %p56
    %p58 = scmp.ne.s32.totalorder %s49, %s50
    %p59 = scmp.eq.s32.totalorder %s18, 0
    %p60 = por %p58, %p59
    %p61 = scmp.ne.s32.totalorder %s49, %s50
    %p62 = scmp.eq.s32.totalorder %s19, 1
    %p63 = por %p61, %p62
    %p65 = scmp.ne.s32.totalorder %s50, %s64
    %p66 = scmp.eq.s32.totalorder %s19, 0
    %p67 = por %p65, %p66
    %s69 = sadd.s32 %s68, 1
    %p72 = scmp.eq.s32.totalorder %s13, 1
    %p73 = scmp.ne.s32.totalorder %s68, %s70
    %p74 = scmp.eq.s32.totalorder %s13, 0
    %p75 = por %p73, %p74
    %p76 = scmp.ne.s32.totalorder %s68, %s70
    %p77 = scmp.eq.s32.totalorder %s18, 1
    %p78 = por %p76, %p77
    %p79 = scmp.ne.s32.totalorder %s70, %s71
    %p80 = scmp.eq.s32.totalorder %s18, 0
    %p81 = por %p79, %p80
    %p82 = scmp.ne.s32.totalorder %s70, %s71
    %p83 = scmp.eq.s32.totalorder %s19, 1
    %p84 = por %p82, %p83
    %p86 = scmp.ne.s32.totalorder %s71, %s85
    %p87 = scmp.eq.s32.totalorder %s19, 0
    %p88 = por %p86, %p87
    %s90 = sadd.s32 %s89, 1
    %p93 = scmp.eq.s32.totalorder %s13, 1
    %p94 = scmp.ne.s32.totalorder %s89, %s91
    %p95 = scmp.eq.s32.totalorder %s13, 0
    %p96 = por %p94, %p95
    %p97 = scmp.ne.s32.totalorder %s89, %s91
    %p98 = scmp.eq.s32.totalorder %s18, 1
    %p99 = por %p97, %p98
    %p100 = scmp.ne.s32.totalorder %s91, %s92
    %p101 = scmp.eq.s32.totalorder %s18, 0
    %p102 = por %p100, %p101
    %p103 = scmp.ne.s32.totalorder %s91, %s92
    %p104 = scmp.eq.s32.totalorder %s19, 1
    %p105 = por %p103, %p104
    %p107 = scmp.ne.s32.totalorder %s92, %s106
    %p108 = scmp.eq.s32.totalorder %s19, 0
    %p109 = por %p107, %p108
    %s111 = sadd.s32 %s110, 1
    %p114 = scmp.eq.s32.totalorder %s13, 1
    %p115 = scmp.ne.s32.totalorder %s110, %s112
    %p116 = scmp.eq.s32.totalorder %s13, 0
    %p117 = por %p115, %p116
    %p118 = scmp.ne.s32.totalorder %s110, %s112
    %p119 = scmp.eq.s32.totalorder %s18, 1
    %p120 = por %p118, %p119
    %p121 = scmp.ne.s32.totalorder %s112, %s113
    %p122 = scmp.eq.s32.totalorder %s18, 0
    %p123 = por %p121, %p122
    %p124 = scmp.ne.s32.totalorder %s112, %s113
    %p125 = scmp.eq.s32.totalorder %s19, 1
    %p126 = por %p124, %p125
    %p128 = scmp.ne.s32.totalorder %s113, %s127
    %p129 = scmp.eq.s32.totalorder %s19, 0
    %p130 = por %p128, %p129
    %s131 = ssub.s32 %s13, %s20
    %p132 = scmp.eq.s32.totalorder %s131, 0
    %s134 = sadd.s32 %s133, 1
    %s135 = scalar_select %p132, %s133, %s134
    %p138 = pneg %p132
    %p139 = scmp.eq.s32.totalorder %s13, 1
    %p140 = por %p138, %p139
    %p141 = scmp.ne.s32.totalorder %s133, %s136
    %p142 = scmp.eq.s32.totalorder %s13, 0
    %p143 = por %p141, %p142
    %p144 = scmp.ne.s32.totalorder %s133, %s136
    %p145 = scmp.eq.s32.totalorder %s18, 1
    %p146 = por %p144, %p145
    %p147 = scmp.ne.s32.totalorder %s136, %s137
    %p148 = scmp.eq.s32.totalorder %s18, 0
    %p149 = por %p147, %p148
    %p150 = scmp.ne.s32.totalorder %s136, %s137
    %p151 = scmp.eq.s32.totalorder %s19, 1
    %p152 = por %p150, %p151
    %p154 = scmp.ne.s32.totalorder %s137, %s153
    %p155 = scmp.eq.s32.totalorder %s19, 0
    %p156 = por %p154, %p155
    %s157 = ssub.s32 %s13, %s20
    %p158 = scmp.eq.s32.totalorder %s157, 0
    %s160 = sadd.s32 %s159, 1
    %s161 = scalar_select %p158, %s159, %s160
    %p164 = pneg %p158
    %p165 = scmp.eq.s32.totalorder %s13, 1
    %p166 = por %p164, %p165
    %p167 = scmp.ne.s32.totalorder %s159, %s162
    %p168 = scmp.eq.s32.totalorder %s13, 0
    %p169 = por %p167, %p168
    %p170 = scmp.ne.s32.totalorder %s159, %s162
    %p171 = scmp.eq.s32.totalorder %s18, 1
    %p172 = por %p170, %p171
    %p173 = scmp.ne.s32.totalorder %s162, %s163
    %p174 = scmp.eq.s32.totalorder %s18, 0
    %p175 = por %p173, %p174
    %p176 = scmp.ne.s32.totalorder %s162, %s163
    %p177 = scmp.eq.s32.totalorder %s19, 1
    %p178 = por %p176, %p177
    %p180 = scmp.ne.s32.totalorder %s163, %s179
    %p181 = scmp.eq.s32.totalorder %s19, 0
    %p182 = por %p180, %p181
    %p183 = scmp.le.s32.totalorder 1, %s13
    %p184 = scmp.lt.s32.totalorder %s13, 3
    %p185 = pnand %p183, %p184
    %p186 = pneg %p185
    // Predicated region
    $region9: #{up_forward.4} parent=5 // pred_check
      _
    $region10: #{up_forward.4} parent=5 // pred_check_branch
      %188 = sbr.rel (%p185) target = $region12
    $region11: #{up_forward.4} parent=5 // pred_region
      %s189 = ssub.s32 %s13, 1
      // Predicated region
      $region13: #{up_forward.4} parent=11 // pred_check
        %p190 = pneg %p60
      $region14: #{up_forward.4} parent=11 // pred_check_branch
        %192 = sbr.rel (%p190) target = $region16
      $region15: #{up_forward.4} parent=11 // pred_region
        _
      $region16: #{up_forward.4} parent=11 // pred_fallthru
        _
      // Predicated region
      $region17: #{up_forward.4} parent=11 // pred_check
        %p193 = pneg %p81
      $region18: #{up_forward.4} parent=11 // pred_check_branch
        %195 = sbr.rel (%p193) target = $region20
      $region19: #{up_forward.4} parent=11 // pred_region
        _
      $region20: #{up_forward.4} parent=11 // pred_fallthru
        _
      // Predicated region
      $region21: #{up_forward.4} parent=11 // pred_check
        %p196 = pneg %p102
      $region22: #{up_forward.4} parent=11 // pred_check_branch
        %198 = sbr.rel (%p196) target = $region24
      $region23: #{up_forward.4} parent=11 // pred_region
        _
      $region24: #{up_forward.4} parent=11 // pred_fallthru
        _
      // Predicated region
      $region25: #{up_forward.4} parent=11 // pred_check
        %p199 = pneg %p123
      $region26: #{up_forward.4} parent=11 // pred_check_branch
        %201 = sbr.rel (%p199) target = $region28
      $region27: #{up_forward.4} parent=11 // pred_region
        _
      $region28: #{up_forward.4} parent=11 // pred_fallthru
        _
    $region12: #{up_forward.4} parent=5 // pred_fallthru
      _
    %p202 = scmp.lt.s32.totalorder %s13, 2
    // Predicated region
    $region29: #{up_forward.4} parent=5 // pred_check
      %p203 = pneg %p202
    $region30: #{up_forward.4} parent=5 // pred_check_branch
      %205 = sbr.rel (%p203) target = $region32
    $region31: #{up_forward.4} parent=5 // pred_region
      // Predicated region
      $region33: #{up_forward.4} parent=31 // pred_check
        %p206 = pneg %p33
      $region34: #{up_forward.4} parent=31 // pred_check_branch
        %208 = sbr.rel (%p206) target = $region36
      $region35: #{up_forward.4} parent=31 // pred_region
        %p209 = scmp.lt.s32.totalorder %s13, 1
        %s210 = scalar_select %p209, %s13, 1
        %s211 = smul.addr %s210, 3
        %s212 = smul.addr %s211, 8
        %s213 = scalar_lea.vmem %s0, %s212
      $region36: #{up_forward.4} parent=31 // pred_fallthru
        _
    $region32: #{up_forward.4} parent=5 // pred_fallthru
      _
    %p214 = scmp.le.s32.totalorder 1, %s13
    %p215 = scmp.lt.s32.totalorder %s13, 3
    %p216 = pnand %p214, %p215
    %p217 = pneg %p216
    // Predicated region
    $region37: #{up_forward.4} parent=5 // pred_check
      _
    $region38: #{up_forward.4} parent=5 // pred_check_branch
      %219 = sbr.rel (%p216) target = $region40
    $region39: #{up_forward.4} parent=5 // pred_region
      %s220 = ssub.s32 %s13, 1
      %p221 = scmp.lt.s32.totalorder %s18, 1
      %s222 = scalar_select %p221, %s18, 1
      %s223 = smul.addr %s222, 3
      %s224 = smul.addr %s223, 8
      %s225 = scalar_lea.vmem %s0, %s224
      %p226 = pneg %p39
      %p227 = pneg %p36
      %p228 = pneg %p60
      %p229 = pneg %p57
      %p230 = pneg %p81
      %p231 = pneg %p78
      %p232 = pneg %p102
      %p233 = pneg %p99
      %p234 = pneg %p123
      %p235 = pneg %p120
      %p236 = pneg %p149
      %p237 = pneg %p146
      %p238 = scmp.lt.s32.totalorder %s18, 1
      %s239 = scalar_select %p238, %s18, 1
      %s240 = smul.addr %s239, 2
      %s241 = smul.addr %s240, 8
      %s242 = scalar_lea.vmem %s5, %s241
      %p243 = pneg %p175
      %p244 = pneg %p172
      %p245 = scmp.lt.s32.totalorder %s18, 1
      %s246 = scalar_select %p245, %s18, 1
      %s247 = smul.addr %s246, 2
      %s248 = scalar_lea.vmem %s6, %s247
      %p249 = scmp.lt.s32.totalorder %s18, 1
      %s250 = scalar_select %p249, %s18, 1
      %s251 = smul.addr %s250, 3
      %s252 = smul.addr %s251, 8
      %s253 = scalar_lea.vmem %s0, %s252
      %p254 = scmp.lt.s32.totalorder %s18, 1
      %s255 = scalar_select %p254, %s18, 1
      %s256 = smul.addr %s255, 2
      %s257 = smul.addr %s256, 8
      %s258 = scalar_lea.vmem %s5, %s257
      %p259 = scmp.lt.s32.totalorder %s18, 1
      %s260 = scalar_select %p259, %s18, 1
      %s261 = smul.addr %s260, 2
      %s262 = scalar_lea.vmem %s6, %s261
      %v264 = vld [vmem:[%s1] sm:$0x1]
      %v265 = vld [vmem:[%s2] sm:$0x1]
      %v266 = vlaneseq
      %v267 = vshrl.u32 %v266, 7
      %v268 = vadd.s32 %v267, 8
      %v269 = vld [vmem:[%s253] sm:$0xff]
      %v270 = vld [vmem:[%s253 + $0x8] sm:$0xff]
      %v272 = vlaneseq
      %v273 = vshrl.u32 %v272, 7
      %v274 = vsub.s32 0, %v273
      %v275 = vrot.slane %v264, %v274
      %v277 = vmul.f32 %v269, %v275
      %v278 = vmul.f32 %v270, %v275
      %v280 = vlaneseq
      %v281 = vshrl.u32 %v280, 7
      %v282 = vsub.s32 0, %v281
      %v283 = vrot.slane %v265, %v282
      %v285 = vadd.f32 %v277, %v283
      %v286 = vadd.f32 %v278, %v283
      %v287 = vmax.f32 %v285, 0.0
      %v288 = vmax.f32 %v286, 0.0
      %vm289 = vcmp.ge.s32.totalorder %v267, 1
      %vm290 = vcmp.ge.s32.totalorder %v268, 1
      %v291 = vsel %vm289, %v287, 0.0
      %v292 = vsel %vm290, %v288, 0.0
      %v293 = vpack.c.bf16 %v292, %v291
      %v294 = vld [vmem:[%s3] sm:$0xf]
      %v295 = vld [vmem:[%s3 + $0x4] sm:$0xf]
      %v296 = vld [vmem:[%s3 + $0x8] sm:$0xf]
      %v297 = vld [vmem:[%s3 + $0xc] sm:$0xf]
      %v298 = vld [vmem:[%s3 + $0x10] sm:$0xf]
      %v299 = vld [vmem:[%s3 + $0x14] sm:$0xf]
      %v300 = vld [vmem:[%s3 + $0x18] sm:$0xf]
      %v301 = vld [vmem:[%s3 + $0x1c] sm:$0xf]
      %v302 = vld [vmem:[%s3 + $0x20] sm:$0xf]
      %v303 = vld [vmem:[%s3 + $0x24] sm:$0xf]
      %v304 = vld [vmem:[%s3 + $0x28] sm:$0xf]
      %v305 = vld [vmem:[%s3 + $0x2c] sm:$0xf]
      %v306 = vld [vmem:[%s3 + $0x30] sm:$0xf]
      %v307 = vld [vmem:[%s3 + $0x34] sm:$0xf]
      %v308 = vld [vmem:[%s3 + $0x38] sm:$0xf]
      %v309 = vld [vmem:[%s3 + $0x3c] sm:$0xf]
      %v310 = vld [vmem:[%s253 + $0x1] sm:$0xff]
      %v311 = vld [vmem:[%s253 + $0x9] sm:$0xff]
      %v312 = vmul.f32 %v310, %v275
      %v313 = vmul.f32 %v311, %v275
      %v314 = vadd.f32 %v312, %v283
      %v315 = vadd.f32 %v313, %v283
      %v316 = vmax.f32 %v314, 0.0
      %v317 = vmax.f32 %v315, 0.0
      %v318 = vpack.c.bf16 %v317, %v316
      %s319 = scalar_lea.vmem %s3, 64
      %v320 = vld [vmem:[%s319] sm:$0xf]
      %v321 = vld [vmem:[%s319 + $0x4] sm:$0xf]
      %v322 = vld [vmem:[%s319 + $0x8] sm:$0xf]
      %v323 = vld [vmem:[%s319 + $0xc] sm:$0xf]
      %v324 = vld [vmem:[%s319 + $0x10] sm:$0xf]
      %v325 = vld [vmem:[%s319 + $0x14] sm:$0xf]
      %v326 = vld [vmem:[%s319 + $0x18] sm:$0xf]
      %v327 = vld [vmem:[%s319 + $0x1c] sm:$0xf]
      %v328 = vld [vmem:[%s319 + $0x20] sm:$0xf]
      %v329 = vld [vmem:[%s319 + $0x24] sm:$0xf]
      %v330 = vld [vmem:[%s319 + $0x28] sm:$0xf]
      %v331 = vld [vmem:[%s319 + $0x2c] sm:$0xf]
      %v332 = vld [vmem:[%s319 + $0x30] sm:$0xf]
      %v333 = vld [vmem:[%s319 + $0x34] sm:$0xf]
      %v334 = vld [vmem:[%s319 + $0x38] sm:$0xf]
      %v335 = vld [vmem:[%s319 + $0x3c] sm:$0xf]
      %v352 = vunpack.c.l.b16 %v320
      %v353 = vunpack.c.l.b16 %v321
      %v354 = vunpack.c.l.b16 %v322
      %v355 = vunpack.c.l.b16 %v323
      %v356 = vunpack.c.l.b16 %v324
      %v357 = vunpack.c.l.b16 %v325
      %v358 = vunpack.c.l.b16 %v326
      %v359 = vunpack.c.l.b16 %v327
      %v360 = vunpack.c.l.b16 %v328
      %v361 = vunpack.c.l.b16 %v329
      %v362 = vunpack.c.l.b16 %v330
      %v363 = vunpack.c.l.b16 %v331
      %v364 = vunpack.c.l.b16 %v332
      %v365 = vunpack.c.l.b16 %v333
      %v366 = vunpack.c.l.b16 %v334
      %v367 = vunpack.c.l.b16 %v335
      %v368 = vpack.c.b16 %v353, %v352
      %v369 = vpack.c.b16 %v355, %v354
      %v370 = vpack.c.b16 %v357, %v356
      %v371 = vpack.c.b16 %v359, %v358
      %v372 = vpack.c.b16 %v361, %v360
      %v373 = vpack.c.b16 %v363, %v362
      %v374 = vpack.c.b16 %v365, %v364
      %v375 = vpack.c.b16 %v367, %v366
      %384 = vmatprep.subr.bf16.mxu0 0
      %385 = vmatpush1.bf16.msra.mxu0 %v368
      %386 = vmatprep.subr.bf16.mxu0 0
      %387 = vmatpush1.bf16.msra.mxu0 %v369
      %388 = vmatprep.subr.bf16.mxu0 0
      %389 = vmatpush1.bf16.msra.mxu0 %v370
      %390 = vmatprep.subr.bf16.mxu0 0
      %391 = vmatpush1.bf16.msra.mxu0 %v371
      %392 = vmatprep.subr.bf16.mxu0 0
      %393 = vmatpush1.bf16.msra.mxu0 %v372
      %394 = vmatprep.subr.bf16.mxu0 0
      %395 = vmatpush1.bf16.msra.mxu0 %v373
      %396 = vmatprep.subr.bf16.mxu0 0
      %397 = vmatpush1.bf16.msra.mxu0 %v374
      %398 = vmatprep.subr.bf16.mxu0 0
      %399 = vmatpush1.bf16.msra.mxu0 %v375
      %400 = vmatprep.subr.bf16.mxu0 0
      %401 = vmatpush1.bf16.msra.mxu0 0
      %402 = vmatprep.subr.bf16.mxu0 0
      %403 = vmatpush1.bf16.msra.mxu0 0
      %404 = vmatprep.subr.bf16.mxu0 0
      %405 = vmatpush1.bf16.msra.mxu0 0
      %406 = vmatprep.subr.bf16.mxu0 0
      %407 = vmatpush1.bf16.msra.mxu0 0
      %408 = vmatprep.subr.bf16.mxu0 0
      %409 = vmatpush1.bf16.msra.mxu0 0
      %410 = vmatprep.subr.bf16.mxu0 0
      %411 = vmatpush1.bf16.msra.mxu0 0
      %412 = vmatprep.subr.bf16.mxu0 0
      %413 = vmatpush1.bf16.msra.mxu0 0
      %414 = vmatprep.subr.bf16.mxu0 0
      %415 = vmatpush1.bf16.msra.mxu0 0
      %416 = vmatprep.mubr.bf16.mxu0 0
      %417 = vmatmul.mubr.bf16.gmra.mrb[0].mxu0 %v318
      %v418 = vpop.f32.mrb[0].mxu0
      %v419 = vadd.f32 0.0, %v418
      %v420 = vpop.f32.mrb[0].mxu0
      %v421 = vpop.f32.mrb[0].mxu0
      %v422 = vadd.f32 0.0, %v421
      %v423 = vpop.f32.mrb[0].mxu0
      %424 = vdwg.mxu0
      %v441 = vunpack.c.l.b16 %v294
      %v442 = vunpack.c.l.b16 %v295
      %v443 = vunpack.c.l.b16 %v296
      %v444 = vunpack.c.l.b16 %v297
      %v445 = vunpack.c.l.b16 %v298
      %v446 = vunpack.c.l.b16 %v299
      %v447 = vunpack.c.l.b16 %v300
      %v448 = vunpack.c.l.b16 %v301
      %v449 = vunpack.c.l.b16 %v302
      %v450 = vunpack.c.l.b16 %v303
      %v451 = vunpack.c.l.b16 %v304
      %v452 = vunpack.c.l.b16 %v305
      %v453 = vunpack.c.l.b16 %v306
      %v454 = vunpack.c.l.b16 %v307
      %v455 = vunpack.c.l.b16 %v308
      %v456 = vunpack.c.l.b16 %v309
      %v457 = vpack.c.b16 %v442, %v441
      %v458 = vpack.c.b16 %v444, %v443
      %v459 = vpack.c.b16 %v446, %v445
      %v460 = vpack.c.b16 %v448, %v447
      %v461 = vpack.c.b16 %v450, %v449
      %v462 = vpack.c.b16 %v452, %v451
      %v463 = vpack.c.b16 %v454, %v453
      %v464 = vpack.c.b16 %v456, %v455
      %473 = vmatprep.subr.bf16.mxu0 0
      %474 = vmatpush1.bf16.msra.mxu0 %v457
      %475 = vmatprep.subr.bf16.mxu0 0
      %476 = vmatpush1.bf16.msra.mxu0 %v458
      %477 = vmatprep.subr.bf16.mxu0 0
      %478 = vmatpush1.bf16.msra.mxu0 %v459
      %479 = vmatprep.subr.bf16.mxu0 0
      %480 = vmatpush1.bf16.msra.mxu0 %v460
      %481 = vmatprep.subr.bf16.mxu0 0
      %482 = vmatpush1.bf16.msra.mxu0 %v461
      %483 = vmatprep.subr.bf16.mxu0 0
      %484 = vmatpush1.bf16.msra.mxu0 %v462
      %485 = vmatprep.subr.bf16.mxu0 0
      %486 = vmatpush1.bf16.msra.mxu0 %v463
      %487 = vmatprep.subr.bf16.mxu0 0
      %488 = vmatpush1.bf16.msra.mxu0 %v464
      %489 = vmatprep.subr.bf16.mxu0 0
      %490 = vmatpush1.bf16.msra.mxu0 0
      %491 = vmatprep.subr.bf16.mxu0 0
      %492 = vmatpush1.bf16.msra.mxu0 0
      %493 = vmatprep.subr.bf16.mxu0 0
      %494 = vmatpush1.bf16.msra.mxu0 0
      %495 = vmatprep.subr.bf16.mxu0 0
      %496 = vmatpush1.bf16.msra.mxu0 0
      %497 = vmatprep.subr.bf16.mxu0 0
      %498 = vmatpush1.bf16.msra.mxu0 0
      %499 = vmatprep.subr.bf16.mxu0 0
      %500 = vmatpush1.bf16.msra.mxu0 0
      %501 = vmatprep.subr.bf16.mxu0 0
      %502 = vmatpush1.bf16.msra.mxu0 0
      %503 = vmatprep.subr.bf16.mxu0 0
      %504 = vmatpush1.bf16.msra.mxu0 0
      %505 = vmatprep.mubr.bf16.mxu0 0
      %506 = vmatmul.mubr.bf16.gmra.mrb[0].mxu0 %v293
      %v507 = vpop.f32.mrb[0].mxu0
      %v508 = vadd.f32 %v419, %v507
      %v509 = vpop.f32.mrb[0].mxu0
      %v510 = vpop.f32.mrb[0].mxu0
      %v511 = vadd.f32 %v422, %v510
      %v512 = vpop.f32.mrb[0].mxu0
      %513 = vdwg.mxu0
      %v514 = vld [vmem:[%s253 + $0x2] sm:$0xff]
      %v515 = vld [vmem:[%s253 + $0xa] sm:$0xff]
      %v516 = vmul.f32 %v514, %v275
      %v517 = vmul.f32 %v515, %v275
      %v518 = vadd.f32 %v516, %v283
      %v519 = vadd.f32 %v517, %v283
      %v520 = vmax.f32 %v518, 0.0
      %v521 = vmax.f32 %v519, 0.0
      %vm522 = vcmp.le.s32.totalorder %v267, 14
      %vm523 = vcmp.le.s32.totalorder %v268, 14
      %v524 = vsel %vm522, %v520, 0.0
      %v525 = vsel %vm523, %v521, 0.0
      %v526 = vpack.c.bf16 %v525, %v524
      %s527 = scalar_lea.vmem %s3, 128
      %v528 = vld [vmem:[%s527] sm:$0xf]
      %v529 = vld [vmem:[%s527 + $0x4] sm:$0xf]
      %v530 = vld [vmem:[%s527 + $0x8] sm:$0xf]
      %v531 = vld [vmem:[%s527 + $0xc] sm:$0xf]
      %v532 = vld [vmem:[%s527 + $0x10] sm:$0xf]
      %v533 = vld [vmem:[%s527 + $0x14] sm:$0xf]
      %v534 = vld [vmem:[%s527 + $0x18] sm:$0xf]
      %v535 = vld [vmem:[%s527 + $0x1c] sm:$0xf]
      %v536 = vld [vmem:[%s527 + $0x20] sm:$0xf]
      %v537 = vld [vmem:[%s527 + $0x24] sm:$0xf]
      %v538 = vld [vmem:[%s527 + $0x28] sm:$0xf]
      %v539 = vld [vmem:[%s527 + $0x2c] sm:$0xf]
      %v540 = vld [vmem:[%s527 + $0x30] sm:$0xf]
      %v541 = vld [vmem:[%s527 + $0x34] sm:$0xf]
      %v542 = vld [vmem:[%s527 + $0x38] sm:$0xf]
      %v543 = vld [vmem:[%s527 + $0x3c] sm:$0xf]
      %v560 = vunpack.c.l.b16 %v528
      %v561 = vunpack.c.l.b16 %v529
      %v562 = vunpack.c.l.b16 %v530
      %v563 = vunpack.c.l.b16 %v531
      %v564 = vunpack.c.l.b16 %v532
      %v565 = vunpack.c.l.b16 %v533
      %v566 = vunpack.c.l.b16 %v534
      %v567 = vunpack.c.l.b16 %v535
      %v568 = vunpack.c.l.b16 %v536
      %v569 = vunpack.c.l.b16 %v537
      %v570 = vunpack.c.l.b16 %v538
      %v571 = vunpack.c.l.b16 %v539
      %v572 = vunpack.c.l.b16 %v540
      %v573 = vunpack.c.l.b16 %v541
      %v574 = vunpack.c.l.b16 %v542
      %v575 = vunpack.c.l.b16 %v543
      %v576 = vpack.c.b16 %v561, %v560
      %v577 = vpack.c.b16 %v563, %v562
      %v578 = vpack.c.b16 %v565, %v564
      %v579 = vpack.c.b16 %v567, %v566
      %v580 = vpack.c.b16 %v569, %v568
      %v581 = vpack.c.b16 %v571, %v570
      %v582 = vpack.c.b16 %v573, %v572
      %v583 = vpack.c.b16 %v575, %v574
      %592 = vmatprep.subr.bf16.mxu0 0
      %593 = vmatpush1.bf16.msra.mxu0 %v576
      %594 = vmatprep.subr.bf16.mxu0 0
      %595 = vmatpush1.bf16.msra.mxu0 %v577
      %596 = vmatprep.subr.bf16.mxu0 0
      %597 = vmatpush1.bf16.msra.mxu0 %v578
      %598 = vmatprep.subr.bf16.mxu0 0
      %599 = vmatpush1.bf16.msra.mxu0 %v579
      %600 = vmatprep.subr.bf16.mxu0 0
      %601 = vmatpush1.bf16.msra.mxu0 %v580
      %602 = vmatprep.subr.bf16.mxu0 0
      %603 = vmatpush1.bf16.msra.mxu0 %v581
      %604 = vmatprep.subr.bf16.mxu0 0
      %605 = vmatpush1.bf16.msra.mxu0 %v582
      %606 = vmatprep.subr.bf16.mxu0 0
      %607 = vmatpush1.bf16.msra.mxu0 %v583
      %608 = vmatprep.subr.bf16.mxu0 0
      %609 = vmatpush1.bf16.msra.mxu0 0
      %610 = vmatprep.subr.bf16.mxu0 0
      %611 = vmatpush1.bf16.msra.mxu0 0
      %612 = vmatprep.subr.bf16.mxu0 0
      %613 = vmatpush1.bf16.msra.mxu0 0
      %614 = vmatprep.subr.bf16.mxu0 0
      %615 = vmatpush1.bf16.msra.mxu0 0
      %616 = vmatprep.subr.bf16.mxu0 0
      %617 = vmatpush1.bf16.msra.mxu0 0
      %618 = vmatprep.subr.bf16.mxu0 0
      %619 = vmatpush1.bf16.msra.mxu0 0
      %620 = vmatprep.subr.bf16.mxu0 0
      %621 = vmatpush1.bf16.msra.mxu0 0
      %622 = vmatprep.subr.bf16.mxu0 0
      %623 = vmatpush1.bf16.msra.mxu0 0
      %624 = vmatprep.mubr.bf16.mxu0 0
      %625 = vmatmul.mubr.bf16.gmra.mrb[0].mxu0 %v526
      %v626 = vpop.f32.mrb[0].mxu0
      %v627 = vadd.f32 0.0, %v626
      %v628 = vpop.f32.mrb[0].mxu0
      %v629 = vpop.f32.mrb[0].mxu0
      %v630 = vadd.f32 0.0, %v629
      %v631 = vpop.f32.mrb[0].mxu0
      %632 = vdwg.mxu0
      %v633 = vadd.f32 %v508, %v627
      %v634 = vadd.f32 %v511, %v630
      %635 = vst [vmem:[%s258] sm:$0xff] %v633
      %636 = vst [vmem:[%s258 + $0x8] sm:$0xff] %v634
      %v637 = vadd.f32 %v633, %v634
      %v638 = vrot.slane %v637, 4
      %v639 = vadd.f32 %v637, %v638
      %v640 = vrot.slane %v639, 2
      %v641 = vadd.f32 %v639, %v640
      %v642 = vrot.slane %v641, 1
      %v643 = vadd.f32 %v641, %v642
      %v644 = vmul.f32 %v633, %v633
      %v645 = vmul.f32 %v634, %v634
      %v646 = vadd.f32 %v644, %v645
      %v647 = vrot.slane %v646, 4
      %v648 = vadd.f32 %v646, %v647
      %v649 = vrot.slane %v648, 2
      %v650 = vadd.f32 %v648, %v649
      %v651 = vrot.slane %v650, 1
      %v652 = vadd.f32 %v650, %v651
      %vm653 = vcmask 1040384
      %v654 = vsel %vm653, %v643, %v652
      %v655 = vld [vmem:[%s4] sm:$0xff]
      %v656 = vld [vmem:[%s4 + $0x8] sm:$0xff]
      %v657 = vld [vmem:[%s4 + $0x10] sm:$0xff]
      %v658 = vld [vmem:[%s4 + $0x18] sm:$0xff]
      %v659 = vld [vmem:[%s4 + $0x20] sm:$0xff]
      %v660 = vld [vmem:[%s4 + $0x28] sm:$0xff]
      %v661 = vld [vmem:[%s4 + $0x30] sm:$0xff]
      %v662 = vld [vmem:[%s4 + $0x38] sm:$0xff]
      %v663 = vld [vmem:[%s4 + $0x40] sm:$0xff]
      %v664 = vld [vmem:[%s4 + $0x48] sm:$0xff]
      %v665 = vld [vmem:[%s4 + $0x50] sm:$0xff]
      %v666 = vld [vmem:[%s4 + $0x58] sm:$0xff]
      %v667 = vld [vmem:[%s4 + $0x60] sm:$0xff]
      %v668 = vld [vmem:[%s4 + $0x68] sm:$0xff]
      %v669 = vld [vmem:[%s4 + $0x70] sm:$0xff]
      %v670 = vld [vmem:[%s4 + $0x78] sm:$0xff]
      %671 = vmatprep.subr.mxu0 0.0
      %672 = vmatpush1.msra.mxu0 %v655
      %673 = vmatprep.subr.mxu0 0.0
      %674 = vmatpush1.msra.mxu0 %v656
      %675 = vmatprep.subr.mxu0 0.0
      %676 = vmatpush1.msra.mxu0 %v657
      %677 = vmatprep.subr.mxu0 0.0
      %678 = vmatpush1.msra.mxu0 %v658
      %679 = vmatprep.subr.mxu0 0.0
      %680 = vmatpush1.msra.mxu0 %v659
      %681 = vmatprep.subr.mxu0 0.0
      %682 = vmatpush1.msra.mxu0 %v660
      %683 = vmatprep.subr.mxu0 0.0
      %684 = vmatpush1.msra.mxu0 %v661
      %685 = vmatprep.subr.mxu0 0.0
      %686 = vmatpush1.msra.mxu0 %v662
      %687 = vmatprep.subr.mxu0 0.0
      %688 = vmatpush1.msra.mxu0 %v663
      %689 = vmatprep.subr.mxu0 0.0
      %690 = vmatpush1.msra.mxu0 %v664
      %691 = vmatprep.subr.mxu0 0.0
      %692 = vmatpush1.msra.mxu0 %v665
      %693 = vmatprep.subr.mxu0 0.0
      %694 = vmatpush1.msra.mxu0 %v666
      %695 = vmatprep.subr.mxu0 0.0
      %696 = vmatpush1.msra.mxu0 %v667
      %697 = vmatprep.subr.mxu0 0.0
      %698 = vmatpush1.msra.mxu0 %v668
      %699 = vmatprep.subr.mxu0 0.0
      %700 = vmatpush1.msra.mxu0 %v669
      %701 = vmatprep.subr.mxu0 0.0
      %702 = vmatpush1.msra.mxu0 %v670
      %703 = vmatprep.subr.mxu0 0.0
      %704 = vmatpush1.msra.mxu0 0.0
      %705 = vmatprep.subr.mxu0 0.0
      %706 = vmatpush1.msra.mxu0 0.0
      %707 = vmatprep.subr.mxu0 0.0
      %708 = vmatpush1.msra.mxu0 0.0
      %709 = vmatprep.subr.mxu0 0.0
      %710 = vmatpush1.msra.mxu0 0.0
      %711 = vmatprep.subr.mxu0 0.0
      %712 = vmatpush1.msra.mxu0 0.0
      %713 = vmatprep.subr.mxu0 0.0
      %714 = vmatpush1.msra.mxu0 0.0
      %715 = vmatprep.subr.mxu0 0.0
      %716 = vmatpush1.msra.mxu0 0.0
      %717 = vmatprep.subr.mxu0 0.0
      %718 = vmatpush1.msra.mxu0 0.0
      %719 = vmatprep.subr.mxu0 0.0
      %720 = vmatpush1.msra.mxu0 0.0
      %721 = vmatprep.subr.mxu0 0.0
      %722 = vmatpush1.msra.mxu0 0.0
      %723 = vmatprep.subr.mxu0 0.0
      %724 = vmatpush1.msra.mxu0 0.0
      %725 = vmatprep.subr.mxu0 0.0
      %726 = vmatpush1.msra.mxu0 0.0
      %727 = vmatprep.subr.mxu0 0.0
      %728 = vmatpush1.msra.mxu0 0.0
      %729 = vmatprep.subr.mxu0 0.0
      %730 = vmatpush1.msra.mxu0 0.0
      %731 = vmatprep.subr.mxu0 0.0
      %732 = vmatpush1.msra.mxu0 0.0
      %733 = vmatprep.subr.mxu0 0.0
      %734 = vmatpush1.msra.mxu0 0.0
      %735 = vmatprep.mubr.f32.mxu0 0.0
      %736 = vmatmul.mubr.f32.gmra.mrb[0].mxu0 %v654
      %v737 = vpop.f32.mrb[0].mxu0
      %v738 = vadd.f32 0.0, %v737
      %v739 = vpop.f32.mrb[0].mxu0
      %740 = vdwg.mxu0
      %vm741 = vcmask 58368
      %742 = vst.msk [vmem:[%s262] sm:$0x3] %vm741, %v738
      %p743 = scmp.lt.s32.totalorder %s18, 1
      %s744 = scalar_select %p743, %s18, 1
      %s745 = smul.addr %s744, 2
      %s746 = smul.addr %s745, 8
      %s747 = scalar_lea.vmem %s5, %s746
      %p748 = scmp.lt.s32.totalorder %s18, 1
      %s749 = scalar_select %p748, %s18, 1
      %s750 = smul.addr %s749, 2
      %s751 = scalar_lea.vmem %s6, %s750
      // Predicated region
      $region41: #{up_forward.4} parent=39 // pred_check
        %p752 = pneg %p146
      $region42: #{up_forward.4} parent=39 // pred_check_branch
        %754 = sbr.rel (%p752) target = $region44
      $region43: #{up_forward.4} parent=39 // pred_region
        _
      $region44: #{up_forward.4} parent=39 // pred_fallthru
        _
      // Predicated region
      $region45: #{up_forward.4} parent=39 // pred_check
        %p755 = pneg %p172
      $region46: #{up_forward.4} parent=39 // pred_check_branch
        %757 = sbr.rel (%p755) target = $region48
      $region47: #{up_forward.4} parent=39 // pred_region
        _
      $region48: #{up_forward.4} parent=39 // pred_fallthru
        _
    $region40: #{up_forward.4} parent=5 // pred_fallthru
      _
    %p758 = scmp.le.s32.totalorder 2, %s13
    // Predicated region
    $region49: #{up_forward.4} parent=5 // pred_check
      %p759 = pneg %p758
    $region50: #{up_forward.4} parent=5 // pred_check_branch
      %761 = sbr.rel (%p759) target = $region52
    $region51: #{up_forward.4} parent=5 // pred_region
      %s762 = ssub.s32 %s13, 2
      // Predicated region
      $region53: #{up_forward.4} parent=51 // pred_check
        %p763 = pneg %p152
      $region54: #{up_forward.4} parent=51 // pred_check_branch
        %765 = sbr.rel (%p763) target = $region56
      $region55: #{up_forward.4} parent=51 // pred_region
        %p766 = scmp.lt.s32.totalorder %s19, 1
        %s767 = scalar_select %p766, %s19, 1
        %s768 = smul.addr %s767, 2
        %s769 = smul.addr %s768, 8
        %s770 = scalar_lea.vmem %s5, %s769
      $region56: #{up_forward.4} parent=51 // pred_fallthru
        _
      // Predicated region
      $region57: #{up_forward.4} parent=51 // pred_check
        %p771 = pneg %p178
      $region58: #{up_forward.4} parent=51 // pred_check_branch
        %773 = sbr.rel (%p771) target = $region60
      $region59: #{up_forward.4} parent=51 // pred_region
        %p774 = scmp.lt.s32.totalorder %s19, 1
        %s775 = scalar_select %p774, %s19, 1
        %s776 = smul.addr %s775, 2
        %s777 = scalar_lea.vmem %s6, %s776
      $region60: #{up_forward.4} parent=51 // pred_fallthru
        _
    $region52: #{up_forward.4} parent=5 // pred_fallthru
      _
  $region6: #{up_forward.4} parent=0 // loop_footer
    %s17 = sadd.s32 1, %s13
  $region7: #{up_forward.4} parent=0 // loop_footer_branch
    %12 = sbr.rel target = $region3
  $region8: #{up_forward.4} parent=0 // loop_exit
    _

// kernel: up_forward.5
$region0: #{up_forward.5}
  #allocation0 [shape = 'u32[]', space=smem, size = 0x4, offset = 0x4, fixed_abs, tag = 'smem constant byte address 0x4 - core index']
  #allocation1 [shape = 'u32[144,128]{1,0:T(1,128)}', space=vmem, size = 0x12000, scoped, tag = 'internal scratch']
  %s0 = inlined_call_operand.vmem [shape: f32[2,16,128], index: 0, kind: input, shape index: {}, may-alias: {0,3}]
  %s1 = inlined_call_operand.vmem [shape: f32[1,128], index: 1, kind: input, shape index: {}]
  %s2 = inlined_call_operand.vmem [shape: f32[1,128], index: 2, kind: input, shape index: {}]
  %s3 = inlined_call_operand.vmem [shape: f32[2,16,128], index: 3, kind: output, shape index: {}, may-alias: {0,3}]
  %s4 = sld [smem:[#allocation0]]
  $region45: #{up_forward.5} parent=0
    _
  %s6 = ssub.s32 1, %s4
  %s7 = scalar_select 0, %s6, %s4
  loop: start=0, step=1, limit=4
  $region2: #{up_forward.5} parent=0 // loop_pre_header
    _
  $region3: #{up_forward.5} parent=0 // loop_header
    %s9 = sphi 0, %s13
    %p10 = scmp.ge.s32.totalorder %s9, 4
    %s19 = sphi 0, %s21
    %s22 = sphi 0, %s19
    %s23 = sphi 0, %s22
    %s39 = sphi 0, %s23
    %s43 = sphi 0, %s43
    %s45 = sphi 0, %s43
    %s46 = sphi 0, %s45
    %s60 = sphi 0, %s46
    %s64 = sphi 0, %s64
    %s66 = sphi 0, %s64
    %s67 = sphi 0, %s66
    %s81 = sphi 0, %s67
    %s87 = sphi 0, %s89
    %s90 = sphi 0, %s87
    %s91 = sphi 0, %s90
    %s107 = sphi 0, %s91
  $region4: #{up_forward.5} parent=0 // loop_header_branch
    %12 = sbr.rel (%p10) target = $region8
  $region5: #{up_forward.5} parent=0 // loop_body
    %s14 = ssub.s32 %s9, 1
    %s15 = ssub.s32 %s9, 2
    %s16 = sadd.s32 %s9, 1
    %s17 = ssub.s32 %s9, %s16
    %p18 = scmp.eq.s32.totalorder %s17, 0
    %s20 = sadd.s32 %s19, 1
    %s21 = scalar_select %p18, %s19, %s20
    %p24 = pneg %p18
    %p25 = scmp.eq.s32.totalorder %s9, 1
    %p26 = por %p24, %p25
    %p27 = scmp.ne.s32.totalorder %s19, %s22
    %p28 = scmp.eq.s32.totalorder %s9, 0
    %p29 = por %p27, %p28
    %p30 = scmp.ne.s32.totalorder %s19, %s22
    %p31 = scmp.eq.s32.totalorder %s14, 1
    %p32 = por %p30, %p31
    %p33 = scmp.ne.s32.totalorder %s22, %s23
    %p34 = scmp.eq.s32.totalorder %s14, 0
    %p35 = por %p33, %p34
    %p36 = scmp.ne.s32.totalorder %s22, %s23
    %p37 = scmp.eq.s32.totalorder %s15, 1
    %p38 = por %p36, %p37
    %p40 = scmp.ne.s32.totalorder %s23, %s39
    %p41 = scmp.eq.s32.totalorder %s15, 0
    %p42 = por %p40, %p41
    %s44 = sadd.s32 %s43, 1
    %p47 = scmp.eq.s32.totalorder %s9, 1
    %p48 = scmp.ne.s32.totalorder %s43, %s45
    %p49 = scmp.eq.s32.totalorder %s9, 0
    %p50 = por %p48, %p49
    %p51 = scmp.ne.s32.totalorder %s43, %s45
    %p52 = scmp.eq.s32.totalorder %s14, 1
    %p53 = por %p51, %p52
    %p54 = scmp.ne.s32.totalorder %s45, %s46
    %p55 = scmp.eq.s32.totalorder %s14, 0
    %p56 = por %p54, %p55
    %p57 = scmp.ne.s32.totalorder %s45, %s46
    %p58 = scmp.eq.s32.totalorder %s15, 1
    %p59 = por %p57, %p58
    %p61 = scmp.ne.s32.totalorder %s46, %s60
    %p62 = scmp.eq.s32.totalorder %s15, 0
    %p63 = por %p61, %p62
    %s65 = sadd.s32 %s64, 1
    %p68 = scmp.eq.s32.totalorder %s9, 1
    %p69 = scmp.ne.s32.totalorder %s64, %s66
    %p70 = scmp.eq.s32.totalorder %s9, 0
    %p71 = por %p69, %p70
    %p72 = scmp.ne.s32.totalorder %s64, %s66
    %p73 = scmp.eq.s32.totalorder %s14, 1
    %p74 = por %p72, %p73
    %p75 = scmp.ne.s32.totalorder %s66, %s67
    %p76 = scmp.eq.s32.totalorder %s14, 0
    %p77 = por %p75, %p76
    %p78 = scmp.ne.s32.totalorder %s66, %s67
    %p79 = scmp.eq.s32.totalorder %s15, 1
    %p80 = por %p78, %p79
    %p82 = scmp.ne.s32.totalorder %s67, %s81
    %p83 = scmp.eq.s32.totalorder %s15, 0
    %p84 = por %p82, %p83
    %s85 = ssub.s32 %s9, %s16
    %p86 = scmp.eq.s32.totalorder %s85, 0
    %s88 = sadd.s32 %s87, 1
    %s89 = scalar_select %p86, %s87, %s88
    %p92 = pneg %p86
    %p93 = scmp.eq.s32.totalorder %s9, 1
    %p94 = por %p92, %p93
    %p95 = scmp.ne.s32.totalorder %s87, %s90
    %p96 = scmp.eq.s32.totalorder %s9, 0
    %p97 = por %p95, %p96
    %p98 = scmp.ne.s32.totalorder %s87, %s90
    %p99 = scmp.eq.s32.totalorder %s14, 1
    %p100 = por %p98, %p99
    %p101 = scmp.ne.s32.totalorder %s90, %s91
    %p102 = scmp.eq.s32.totalorder %s14, 0
    %p103 = por %p101, %p102
    %p104 = scmp.ne.s32.totalorder %s90, %s91
    %p105 = scmp.eq.s32.totalorder %s15, 1
    %p106 = por %p104, %p105
    %p108 = scmp.ne.s32.totalorder %s91, %s107
    %p109 = scmp.eq.s32.totalorder %s15, 0
    %p110 = por %p108, %p109
    %p111 = scmp.le.s32.totalorder 1, %s9
    %p112 = scmp.lt.s32.totalorder %s9, 3
    %p113 = pnand %p111, %p112
    %p114 = pneg %p113
    // Predicated region
    $region9: #{up_forward.5} parent=5 // pred_check
      _
    $region10: #{up_forward.5} parent=5 // pred_check_branch
      %116 = sbr.rel (%p113) target = $region12
    $region11: #{up_forward.5} parent=5 // pred_region
      %s117 = ssub.s32 %s9, 1
      // Predicated region
      $region13: #{up_forward.5} parent=11 // pred_check
        %p118 = pneg %p56
      $region14: #{up_forward.5} parent=11 // pred_check_branch
        %120 = sbr.rel (%p118) target = $region16
      $region15: #{up_forward.5} parent=11 // pred_region
        _
      $region16: #{up_forward.5} parent=11 // pred_fallthru
        _
      // Predicated region
      $region17: #{up_forward.5} parent=11 // pred_check
        %p121 = pneg %p77
      $region18: #{up_forward.5} parent=11 // pred_check_branch
        %123 = sbr.rel (%p121) target = $region20
      $region19: #{up_forward.5} parent=11 // pred_region
        _
      $region20: #{up_forward.5} parent=11 // pred_fallthru
        _
    $region12: #{up_forward.5} parent=5 // pred_fallthru
      _
    %p124 = scmp.lt.s32.totalorder %s9, 2
    // Predicated region
    $region21: #{up_forward.5} parent=5 // pred_check
      %p125 = pneg %p124
    $region22: #{up_forward.5} parent=5 // pred_check_branch
      %127 = sbr.rel (%p125) target = $region24
    $region23: #{up_forward.5} parent=5 // pred_region
      // Predicated region
      $region25: #{up_forward.5} parent=23 // pred_check
        %p128 = pneg %p29
      $region26: #{up_forward.5} parent=23 // pred_check_branch
        %130 = sbr.rel (%p128) target = $region28
      $region27: #{up_forward.5} parent=23 // pred_region
        %p131 = scmp.lt.s32.totalorder %s9, 1
        %s132 = scalar_select %p131, %s9, 1
        %s133 = smul.addr %s132, 2
        %s134 = smul.addr %s133, 8
        %s135 = scalar_lea.vmem %s0, %s134
      $region28: #{up_forward.5} parent=23 // pred_fallthru
        _
    $region24: #{up_forward.5} parent=5 // pred_fallthru
      _
    %p136 = scmp.le.s32.totalorder 1, %s9
    %p137 = scmp.lt.s32.totalorder %s9, 3
    %p138 = pnand %p136, %p137
    %p139 = pneg %p138
    // Predicated region
    $region29: #{up_forward.5} parent=5 // pred_check
      _
    $region30: #{up_forward.5} parent=5 // pred_check_branch
      %141 = sbr.rel (%p138) target = $region32
    $region31: #{up_forward.5} parent=5 // pred_region
      %s142 = ssub.s32 %s9, 1
      %p143 = scmp.lt.s32.totalorder %s14, 1
      %s144 = scalar_select %p143, %s14, 1
      %s145 = smul.addr %s144, 2
      %s146 = smul.addr %s145, 8
      %s147 = scalar_lea.vmem %s0, %s146
      %p148 = pneg %p35
      %p149 = pneg %p32
      %p150 = pneg %p56
      %p151 = pneg %p53
      %p152 = pneg %p77
      %p153 = pneg %p74
      %p154 = pneg %p103
      %p155 = pneg %p100
      %p156 = scmp.lt.s32.totalorder %s14, 1
      %s157 = scalar_select %p156, %s14, 1
      %s158 = smul.addr %s157, 2
      %s159 = smul.addr %s158, 8
      %s160 = scalar_lea.vmem %s3, %s159
      %p161 = scmp.lt.s32.totalorder %s14, 1
      %s162 = scalar_select %p161, %s14, 1
      %s163 = smul.addr %s162, 2
      %s164 = smul.addr %s163, 8
      %s165 = scalar_lea.vmem %s0, %s164
      %p166 = scmp.lt.s32.totalorder %s14, 1
      %s167 = scalar_select %p166, %s14, 1
      %s168 = smul.addr %s167, 2
      %s169 = smul.addr %s168, 8
      %s170 = scalar_lea.vmem %s3, %s169
      %v171 = vld [vmem:[%s165] sm:$0xff]
      %v172 = vld [vmem:[%s165 + $0x8] sm:$0xff]
      %v173 = vld [vmem:[%s1] sm:$0x1]
      %v175 = vlaneseq
      %v176 = vshrl.u32 %v175, 7
      %v177 = vsub.s32 0, %v176
      %v178 = vrot.slane %v173, %v177
      %v180 = vmul.f32 %v171, %v178
      %v181 = vmul.f32 %v172, %v178
      %v182 = vld [vmem:[%s2] sm:$0x1]
      %v184 = vlaneseq
      %v185 = vshrl.u32 %v184, 7
      %v186 = vsub.s32 0, %v185
      %v187 = vrot.slane %v182, %v186
      %v189 = vadd.f32 %v180, %v187
      %v190 = vadd.f32 %v181, %v187
      %v191 = vmax.f32 %v189, 0.0
      %v192 = vmax.f32 %v190, 0.0
      %193 = vst [vmem:[%s170] sm:$0xff] %v191
      %194 = vst [vmem:[%s170 + $0x8] sm:$0xff] %v192
      %p195 = scmp.lt.s32.totalorder %s14, 1
      %s196 = scalar_select %p195, %s14, 1
      %s197 = smul.addr %s196, 2
      %s198 = smul.addr %s197, 8
      %s199 = scalar_lea.vmem %s3, %s198
      // Predicated region
      $region33: #{up_forward.5} parent=31 // pred_check
        %p200 = pneg %p100
      $region34: #{up_forward.5} parent=31 // pred_check_branch
        %202 = sbr.rel (%p200) target = $region36
      $region35: #{up_forward.5} parent=31 // pred_region
        _
      $region36: #{up_forward.5} parent=31 // pred_fallthru
        _
    $region32: #{up_forward.5} parent=5 // pred_fallthru
      _
    %p203 = scmp.le.s32.totalorder 2, %s9
    // Predicated region
    $region37: #{up_forward.5} parent=5 // pred_check
      %p204 = pneg %p203
    $region38: #{up_forward.5} parent=5 // pred_check_branch
      %206 = sbr.rel (%p204) target = $region40
    $region39: #{up_forward.5} parent=5 // pred_region
      %s207 = ssub.s32 %s9, 2
      // Predicated region
      $region41: #{up_forward.5} parent=39 // pred_check
        %p208 = pneg %p106
      $region42: #{up_forward.5} parent=39 // pred_check_branch
        %210 = sbr.rel (%p208) target = $region44
      $region43: #{up_forward.5} parent=39 // pred_region
        %p211 = scmp.lt.s32.totalorder %s15, 1
        %s212 = scalar_select %p211, %s15, 1
        %s213 = smul.addr %s212, 2
        %s214 = smul.addr %s213, 8
        %s215 = scalar_lea.vmem %s3, %s214
      $region44: #{up_forward.5} parent=39 // pred_fallthru
        _
    $region40: #{up_forward.5} parent=5 // pred_fallthru
      _
  $region6: #{up_forward.5} parent=0 // loop_footer
    %s13 = sadd.s32 1, %s9
  $region7: #{up_forward.5} parent=0 // loop_footer_branch
    %8 = sbr.rel target = $region3
  $region8: #{up_forward.5} parent=0 // loop_exit
    _

</llo_original>
